<compile_context>
chip_gen: v6e
topology: v6e:2x2x1
jax: 0.10.0
libtpu: 0.0.40
codegen_flags: <defaults>
</compile_context>

<pallas_src>
import functools

import jax
import jax.numpy as jnp
from jax import lax
from jax.experimental import pallas as pl
from jax.experimental.pallas import tpu as pltpu

# ---------------- problem sizes (small, deterministic) ----------------
N = 8          # batch (multiple of 8 -> sublane-aligned per-step slices)
T = 16         # time steps
F = 32         # input_size
H = 32         # hidden_size
O = 32         # project (output features)
BN_EPS = 1e-5


def variant_rnn_kernel(n, x_ref, w_ih_ref, w_hh_ref, b_ref, w_p_ref, b_p_ref,
                       out_ref):
    """Single-invocation VariantRNN forward (everything VMEM/register resident).

    n         : (static) rows per time step == batch size
    x_ref     : (T*N, F)   bf16 time-major flattened input (row = t*N + b)
    w_ih_ref  : (F, 4H)    bf16 LSTM input weights (transposed, gates i|f|g|o,
                           g-gate columns pre-scaled by 2)
    w_hh_ref  : (H, 4H)    bf16 LSTM hidden weights (transposed, g cols x2)
    b_ref     : (1, 4H)    f32  b_ih + b_hh (g cols x2)
    w_p_ref   : (H, O)     bf16 projection weight with BatchNorm(eval) folded
    b_p_ref   : (1, O)     f32  projection bias with BatchNorm(eval) folded
    out_ref   : (T*N, O)   f32  output (transposed back to N x T x O outside)
    """
    tn = x_ref.shape[0]
    h4 = w_ih_ref.shape[1]
    h = h4 // 4
    t_steps = tn // n

    # 1) One fused single-pass bf16 MXU matmul for the input->gate projection
    #    of ALL (T*N) rows; f32 accumulation.  Kept in registers.
    xg = jnp.dot(x_ref[...], w_ih_ref[...],
                 preferred_element_type=jnp.float32) + b_ref[...]

    # 2) Sequential LSTM recurrence, statically unrolled; h/c carried in vregs.
    h_t = jnp.zeros((n, h), jnp.float32)
    c_t = jnp.zeros((n, h), jnp.float32)
    hs = []
    for t in range(t_steps):
        row = t * n                                       # static, 8-aligned
        g = xg[row:row + n, :] + jnp.dot(
            h_t.astype(w_hh_ref.dtype), w_hh_ref[...],
            preferred_element_type=jnp.float32)
        # One full-width (n, 4H) sigmoid for all four gates.  The g-gate
        # pre-activations were pre-scaled by 2, so tanh(x) = 2*sigmoid(2x)-1.
        # pl.reciprocal(approx=True): divide goes to the EUP vrcp slot.
        s = pl.reciprocal(1.0 + jnp.exp(-g), approx=True)
        i_g = s[:, 0 * h:1 * h]
        f_g = s[:, 1 * h:2 * h]
        g_g = 2.0 * s[:, 2 * h:3 * h] - 1.0
        o_g = s[:, 3 * h:4 * h]
        c_t = f_g * c_t + i_g * g_g
        h_t = o_g * jnp.tanh(c_t)
        hs.append(h_t)

    # 3) Fused projection + folded BatchNorm(eval) + ReLU epilogue,
    #    one single-pass bf16 (T*N, H) @ (H, O) matmul.  Dropout(p=0) = id.
    h_all = jnp.concatenate(hs, axis=0).astype(w_p_ref.dtype)
    y = jnp.dot(h_all, w_p_ref[...],
                preferred_element_type=jnp.float32) + b_p_ref[...]
    out_ref[...] = jnp.maximum(y, 0.0).astype(out_ref.dtype)


@jax.jit
def variant_rnn_forward(x, w_ih, w_hh, b, w_p, b_p):
    n, t, f = x.shape
    o = w_p.shape[1]

    # Time-major flatten + bf16 cast outside the kernel (free layout plumbing
    # in XLA): row index = t*N + batch, so each recurrence step reads an
    # aligned contiguous N-row slab.
    x_tm = jnp.transpose(x, (1, 0, 2)).reshape(t * n, f).astype(jnp.bfloat16)

    out_flat = pl.pallas_call(
        functools.partial(variant_rnn_kernel, n),
        out_shape=jax.ShapeDtypeStruct((t * n, o), jnp.float32),
        in_specs=[pl.BlockSpec(memory_space=pltpu.MemorySpace.VMEM)] * 6,
        out_specs=pl.BlockSpec(memory_space=pltpu.MemorySpace.VMEM),
    )(x_tm, w_ih, w_hh, b, w_p, b_p)

    # back to batch-first N x T x O
    return jnp.transpose(out_flat.reshape(t, n, o), (1, 0, 2))


def prepare_params(w_ih, w_hh, b_ih, b_hh, w_p, b_p, gamma, beta, mean, var,
                   eps=BN_EPS):
    """One-time parameter preparation (all in f32, then cast matmul operands
    to bf16):
      * combine LSTM biases,
      * pre-scale the g-gate columns of w_ih / w_hh / bias by 2 so the kernel
        can use tanh(x) = 2*sigmoid(2x) - 1 with a single full-width sigmoid,
      * fold eval-mode BatchNorm1d + projection bias into the projection.
    """
    h = w_hh.shape[0]
    gscale = jnp.ones((4 * h,), jnp.float32).at[2 * h:3 * h].set(2.0)
    w_ih_s = (w_ih * gscale[None, :]).astype(jnp.bfloat16)
    w_hh_s = (w_hh * gscale[None, :]).astype(jnp.bfloat16)
    b_s = ((b_ih + b_hh) * gscale).reshape(1, 4 * h)

    scale = gamma / jnp.sqrt(var + eps)                       # (O,)
    w_pf = (w_p * scale[None, :]).astype(jnp.bfloat16)        # (H, O)
    b_pf = ((b_p - mean) * scale + beta).reshape(1, -1)       # (1, O)
    return w_ih_s, w_hh_s, b_s, w_pf, b_pf


def variant_rnn_reference(x, w_ih, w_hh, b, w_p, b_p, gamma, beta, mean, var):
    """Pure-JAX f32 reference mirroring the PyTorch forward (BN in eval mode)."""
    n, t, f = x.shape
    h = w_hh.shape[0]
    hp = lax.Precision.HIGHEST
    hs = []
    h_t = jnp.zeros((n, h), jnp.float32)
    c_t = jnp.zeros((n, h), jnp.float32)
    for step in range(t):
        g = (jnp.dot(x[:, step, :], w_ih, precision=hp)
             + jnp.dot(h_t, w_hh, precision=hp) + b)
        i_g = jax.nn.sigmoid(g[:, 0 * h:1 * h])
        f_g = jax.nn.sigmoid(g[:, 1 * h:2 * h])
        g_g = jnp.tanh(g[:, 2 * h:3 * h])
        o_g = jax.nn.sigmoid(g[:, 3 * h:4 * h])
        c_t = f_g * c_t + i_g * g_g
        h_t = o_g * jnp.tanh(c_t)
        hs.append(h_t)
    hid = jnp.stack(hs, axis=1)                                # (N, T, H)
    out = jnp.dot(hid, w_p, precision=hp) + b_p                # projection
    out = (out - mean) / jnp.sqrt(var + BN_EPS) * gamma + beta  # BN (eval)
    out = jnp.maximum(out, 0.0)                    # ReLU; Dropout(p=0) = id
    return out


if __name__ == "__main__":
    key = jax.random.PRNGKey(0)
    ks = jax.random.split(key, 11)

    x = jax.random.normal(ks[0], (N, T, F), dtype=jnp.float32)

    # LSTM parameters (PyTorch shapes, stored transposed; gate order i|f|g|o).
    w_ih = jax.random.normal(ks[1], (F, 4 * H), dtype=jnp.float32) * 0.1
    w_hh = jax.random.normal(ks[2], (H, 4 * H), dtype=jnp.float32) * 0.1
    b_ih = jax.random.normal(ks[3], (4 * H,), dtype=jnp.float32) * 0.1
    b_hh = jax.random.normal(ks[4], (4 * H,), dtype=jnp.float32) * 0.1
    # Projection Linear(H -> O) and BatchNorm1d(O) running stats / affine.
    w_p = jax.random.normal(ks[5], (H, O), dtype=jnp.float32) * 0.1
    b_p = jax.random.normal(ks[6], (O,), dtype=jnp.float32) * 0.1
    gamma = 1.0 + 0.1 * jax.random.normal(ks[7], (O,), dtype=jnp.float32)
    beta = 0.1 * jax.random.normal(ks[8], (O,), dtype=jnp.float32)
    mean = 0.1 * jax.random.normal(ks[9], (O,), dtype=jnp.float32)
    var = 1.0 + 0.5 * jax.random.uniform(ks[10], (O,), dtype=jnp.float32)

    # One-time parameter preparation (not per call).
    w_ih_k, w_hh_k, b_k, w_p_k, b_p_k = prepare_params(
        w_ih, w_hh, b_ih, b_hh, w_p, b_p, gamma, beta, mean, var)

    out = variant_rnn_forward(x, w_ih_k, w_hh_k, b_k, w_p_k, b_p_k)
    jax.block_until_ready(out)

    out_ref = variant_rnn_reference(x, w_ih, w_hh, (b_ih + b_hh), w_p, b_p,
                                    gamma, beta, mean, var)
    assert out.shape == (N, T, O)
    err = float(jnp.max(jnp.abs(out - out_ref)))
    # bf16 single-pass MXU matmuls + approx reciprocal (requested perf
    # optimizations) vs. the exact-f32 reference: loosened tolerance.
    assert jnp.allclose(out, out_ref, atol=5e-2, rtol=5e-2), err
    print("KERNEL_OK")
</pallas_src>

<mosaic_0001>
module attributes {stable_mosaic.version = 11 : i64} {
  func.func @variant_rnn_kernel(%arg0: memref<128x32xbf16, #tpu.memory_space<vmem>>, %arg1: memref<32x128xbf16, #tpu.memory_space<vmem>>, %arg2: memref<32x128xbf16, #tpu.memory_space<vmem>>, %arg3: memref<1x128xf32, #tpu.memory_space<vmem>>, %arg4: memref<32x32xbf16, #tpu.memory_space<vmem>>, %arg5: memref<1x32xf32, #tpu.memory_space<vmem>>, %arg6: memref<128x32xf32, #tpu.memory_space<vmem>>) attributes {dimension_semantics = [], scalar_prefetch = 0 : i64, scratch_operands = 0 : i64, tpu.core_type = #tpu.core_type<tc>} {
    %c0 = arith.constant 0 : index
    %c0_0 = arith.constant 0 : index
    %0 = vector.load %arg0[%c0, %c0_0] : memref<128x32xbf16, #tpu.memory_space<vmem>>, vector<128x32xbf16>
    %c0_1 = arith.constant 0 : index
    %c0_2 = arith.constant 0 : index
    %1 = vector.load %arg1[%c0_1, %c0_2] : memref<32x128xbf16, #tpu.memory_space<vmem>>, vector<32x128xbf16>
    %cst = arith.constant dense<0.000000e+00> : vector<128x128xf32>
    %2 = tpu.matmul %0, %1, %cst {dimension_numbers = #tpu.dot_dimension_numbers<[1], [0], [0], [1], [0, 0, 1, 1], [], []>} : vector<128x32xbf16>, vector<32x128xbf16>, vector<128x128xf32> -> vector<128x128xf32>
    %c0_3 = arith.constant 0 : index
    %c0_4 = arith.constant 0 : index
    %3 = vector.load %arg3[%c0_3, %c0_4] : memref<1x128xf32, #tpu.memory_space<vmem>>, vector<1x128xf32>
    %4 = vector.broadcast %3 : vector<1x128xf32> to vector<128x128xf32>
    %5 = arith.addf %2, %4 : vector<128x128xf32>
    %cst_5 = arith.constant 0.000000e+00 : f32
    %6 = vector.broadcast %cst_5 : f32 to vector<8x32xf32>
    %cst_6 = arith.constant 0.000000e+00 : f32
    %7 = vector.broadcast %cst_6 : f32 to vector<8x32xf32>
    %8 = vector.extract_strided_slice %5 {offsets = [0, 0], sizes = [8, 128], strides = [1, 1]} : vector<128x128xf32> to vector<8x128xf32>
    %9 = arith.truncf %6 : vector<8x32xf32> to vector<8x32xbf16>
    %c0_7 = arith.constant 0 : index
    %c0_8 = arith.constant 0 : index
    %10 = vector.load %arg2[%c0_7, %c0_8] : memref<32x128xbf16, #tpu.memory_space<vmem>>, vector<32x128xbf16>
    %cst_9 = arith.constant dense<0.000000e+00> : vector<8x128xf32>
    %11 = tpu.matmul %9, %10, %cst_9 {dimension_numbers = #tpu.dot_dimension_numbers<[1], [0], [0], [1], [0, 0, 1, 1], [], []>} : vector<8x32xbf16>, vector<32x128xbf16>, vector<8x128xf32> -> vector<8x128xf32>
    %12 = arith.addf %8, %11 : vector<8x128xf32>
    %cst_10 = arith.constant 0.000000e+00 : f32
    %13 = vector.broadcast %cst_10 : f32 to vector<8x128xf32>
    %14 = arith.subf %13, %12 : vector<8x128xf32>
    %15 = math.exp %14 : vector<8x128xf32>
    %cst_11 = arith.constant 1.000000e+00 : f32
    %16 = vector.broadcast %cst_11 : f32 to vector<8x128xf32>
    %17 = arith.addf %16, %15 : vector<8x128xf32>
    %18 = tpu.reciprocal %17 {approx = true} : vector<8x128xf32> -> vector<8x128xf32>
    %19 = vector.extract_strided_slice %18 {offsets = [0, 0], sizes = [8, 32], strides = [1, 1]} : vector<8x128xf32> to vector<8x32xf32>
    %20 = vector.extract_strided_slice %18 {offsets = [0, 32], sizes = [8, 32], strides = [1, 1]} : vector<8x128xf32> to vector<8x32xf32>
    %21 = vector.extract_strided_slice %18 {offsets = [0, 64], sizes = [8, 32], strides = [1, 1]} : vector<8x128xf32> to vector<8x32xf32>
    %cst_12 = arith.constant 2.000000e+00 : f32
    %22 = vector.broadcast %cst_12 : f32 to vector<8x32xf32>
    %23 = arith.mulf %22, %21 : vector<8x32xf32>
    %cst_13 = arith.constant 1.000000e+00 : f32
    %24 = vector.broadcast %cst_13 : f32 to vector<8x32xf32>
    %25 = arith.subf %23, %24 : vector<8x32xf32>
    %26 = vector.extract_strided_slice %18 {offsets = [0, 96], sizes = [8, 32], strides = [1, 1]} : vector<8x128xf32> to vector<8x32xf32>
    %27 = arith.mulf %20, %7 : vector<8x32xf32>
    %28 = arith.mulf %19, %25 : vector<8x32xf32>
    %29 = arith.addf %27, %28 : vector<8x32xf32>
    %30 = math.tanh %29 : vector<8x32xf32>
    %31 = arith.mulf %26, %30 : vector<8x32xf32>
    %32 = vector.extract_strided_slice %5 {offsets = [8, 0], sizes = [8, 128], strides = [1, 1]} : vector<128x128xf32> to vector<8x128xf32>
    %33 = arith.truncf %31 : vector<8x32xf32> to vector<8x32xbf16>
    %c0_14 = arith.constant 0 : index
    %c0_15 = arith.constant 0 : index
    %34 = vector.load %arg2[%c0_14, %c0_15] : memref<32x128xbf16, #tpu.memory_space<vmem>>, vector<32x128xbf16>
    %cst_16 = arith.constant dense<0.000000e+00> : vector<8x128xf32>
    %35 = tpu.matmul %33, %34, %cst_16 {dimension_numbers = #tpu.dot_dimension_numbers<[1], [0], [0], [1], [0, 0, 1, 1], [], []>} : vector<8x32xbf16>, vector<32x128xbf16>, vector<8x128xf32> -> vector<8x128xf32>
    %36 = arith.addf %32, %35 : vector<8x128xf32>
    %cst_17 = arith.constant 0.000000e+00 : f32
    %37 = vector.broadcast %cst_17 : f32 to vector<8x128xf32>
    %38 = arith.subf %37, %36 : vector<8x128xf32>
    %39 = math.exp %38 : vector<8x128xf32>
    %cst_18 = arith.constant 1.000000e+00 : f32
    %40 = vector.broadcast %cst_18 : f32 to vector<8x128xf32>
    %41 = arith.addf %40, %39 : vector<8x128xf32>
    %42 = tpu.reciprocal %41 {approx = true} : vector<8x128xf32> -> vector<8x128xf32>
    %43 = vector.extract_strided_slice %42 {offsets = [0, 0], sizes = [8, 32], strides = [1, 1]} : vector<8x128xf32> to vector<8x32xf32>
    %44 = vector.extract_strided_slice %42 {offsets = [0, 32], sizes = [8, 32], strides = [1, 1]} : vector<8x128xf32> to vector<8x32xf32>
    %45 = vector.extract_strided_slice %42 {offsets = [0, 64], sizes = [8, 32], strides = [1, 1]} : vector<8x128xf32> to vector<8x32xf32>
    %cst_19 = arith.constant 2.000000e+00 : f32
    %46 = vector.broadcast %cst_19 : f32 to vector<8x32xf32>
    %47 = arith.mulf %46, %45 : vector<8x32xf32>
    %cst_20 = arith.constant 1.000000e+00 : f32
    %48 = vector.broadcast %cst_20 : f32 to vector<8x32xf32>
    %49 = arith.subf %47, %48 : vector<8x32xf32>
    %50 = vector.extract_strided_slice %42 {offsets = [0, 96], sizes = [8, 32], strides = [1, 1]} : vector<8x128xf32> to vector<8x32xf32>
    %51 = arith.mulf %44, %29 : vector<8x32xf32>
    %52 = arith.mulf %43, %49 : vector<8x32xf32>
    %53 = arith.addf %51, %52 : vector<8x32xf32>
    %54 = math.tanh %53 : vector<8x32xf32>
    %55 = arith.mulf %50, %54 : vector<8x32xf32>
    %56 = vector.extract_strided_slice %5 {offsets = [16, 0], sizes = [8, 128], strides = [1, 1]} : vector<128x128xf32> to vector<8x128xf32>
    %57 = arith.truncf %55 : vector<8x32xf32> to vector<8x32xbf16>
    %c0_21 = arith.constant 0 : index
    %c0_22 = arith.constant 0 : index
    %58 = vector.load %arg2[%c0_21, %c0_22] : memref<32x128xbf16, #tpu.memory_space<vmem>>, vector<32x128xbf16>
    %cst_23 = arith.constant dense<0.000000e+00> : vector<8x128xf32>
    %59 = tpu.matmul %57, %58, %cst_23 {dimension_numbers = #tpu.dot_dimension_numbers<[1], [0], [0], [1], [0, 0, 1, 1], [], []>} : vector<8x32xbf16>, vector<32x128xbf16>, vector<8x128xf32> -> vector<8x128xf32>
    %60 = arith.addf %56, %59 : vector<8x128xf32>
    %cst_24 = arith.constant 0.000000e+00 : f32
    %61 = vector.broadcast %cst_24 : f32 to vector<8x128xf32>
    %62 = arith.subf %61, %60 : vector<8x128xf32>
    %63 = math.exp %62 : vector<8x128xf32>
    %cst_25 = arith.constant 1.000000e+00 : f32
    %64 = vector.broadcast %cst_25 : f32 to vector<8x128xf32>
    %65 = arith.addf %64, %63 : vector<8x128xf32>
    %66 = tpu.reciprocal %65 {approx = true} : vector<8x128xf32> -> vector<8x128xf32>
    %67 = vector.extract_strided_slice %66 {offsets = [0, 0], sizes = [8, 32], strides = [1, 1]} : vector<8x128xf32> to vector<8x32xf32>
    %68 = vector.extract_strided_slice %66 {offsets = [0, 32], sizes = [8, 32], strides = [1, 1]} : vector<8x128xf32> to vector<8x32xf32>
    %69 = vector.extract_strided_slice %66 {offsets = [0, 64], sizes = [8, 32], strides = [1, 1]} : vector<8x128xf32> to vector<8x32xf32>
    %cst_26 = arith.constant 2.000000e+00 : f32
    %70 = vector.broadcast %cst_26 : f32 to vector<8x32xf32>
    %71 = arith.mulf %70, %69 : vector<8x32xf32>
    %cst_27 = arith.constant 1.000000e+00 : f32
    %72 = vector.broadcast %cst_27 : f32 to vector<8x32xf32>
    %73 = arith.subf %71, %72 : vector<8x32xf32>
    %74 = vector.extract_strided_slice %66 {offsets = [0, 96], sizes = [8, 32], strides = [1, 1]} : vector<8x128xf32> to vector<8x32xf32>
    %75 = arith.mulf %68, %53 : vector<8x32xf32>
    %76 = arith.mulf %67, %73 : vector<8x32xf32>
    %77 = arith.addf %75, %76 : vector<8x32xf32>
    %78 = math.tanh %77 : vector<8x32xf32>
    %79 = arith.mulf %74, %78 : vector<8x32xf32>
    %80 = vector.extract_strided_slice %5 {offsets = [24, 0], sizes = [8, 128], strides = [1, 1]} : vector<128x128xf32> to vector<8x128xf32>
    %81 = arith.truncf %79 : vector<8x32xf32> to vector<8x32xbf16>
    %c0_28 = arith.constant 0 : index
    %c0_29 = arith.constant 0 : index
    %82 = vector.load %arg2[%c0_28, %c0_29] : memref<32x128xbf16, #tpu.memory_space<vmem>>, vector<32x128xbf16>
    %cst_30 = arith.constant dense<0.000000e+00> : vector<8x128xf32>
    %83 = tpu.matmul %81, %82, %cst_30 {dimension_numbers = #tpu.dot_dimension_numbers<[1], [0], [0], [1], [0, 0, 1, 1], [], []>} : vector<8x32xbf16>, vector<32x128xbf16>, vector<8x128xf32> -> vector<8x128xf32>
    %84 = arith.addf %80, %83 : vector<8x128xf32>
    %cst_31 = arith.constant 0.000000e+00 : f32
    %85 = vector.broadcast %cst_31 : f32 to vector<8x128xf32>
    %86 = arith.subf %85, %84 : vector<8x128xf32>
    %87 = math.exp %86 : vector<8x128xf32>
    %cst_32 = arith.constant 1.000000e+00 : f32
    %88 = vector.broadcast %cst_32 : f32 to vector<8x128xf32>
    %89 = arith.addf %88, %87 : vector<8x128xf32>
    %90 = tpu.reciprocal %89 {approx = true} : vector<8x128xf32> -> vector<8x128xf32>
    %91 = vector.extract_strided_slice %90 {offsets = [0, 0], sizes = [8, 32], strides = [1, 1]} : vector<8x128xf32> to vector<8x32xf32>
    %92 = vector.extract_strided_slice %90 {offsets = [0, 32], sizes = [8, 32], strides = [1, 1]} : vector<8x128xf32> to vector<8x32xf32>
    %93 = vector.extract_strided_slice %90 {offsets = [0, 64], sizes = [8, 32], strides = [1, 1]} : vector<8x128xf32> to vector<8x32xf32>
    %cst_33 = arith.constant 2.000000e+00 : f32
    %94 = vector.broadcast %cst_33 : f32 to vector<8x32xf32>
    %95 = arith.mulf %94, %93 : vector<8x32xf32>
    %cst_34 = arith.constant 1.000000e+00 : f32
    %96 = vector.broadcast %cst_34 : f32 to vector<8x32xf32>
    %97 = arith.subf %95, %96 : vector<8x32xf32>
    %98 = vector.extract_strided_slice %90 {offsets = [0, 96], sizes = [8, 32], strides = [1, 1]} : vector<8x128xf32> to vector<8x32xf32>
    %99 = arith.mulf %92, %77 : vector<8x32xf32>
    %100 = arith.mulf %91, %97 : vector<8x32xf32>
    %101 = arith.addf %99, %100 : vector<8x32xf32>
    %102 = math.tanh %101 : vector<8x32xf32>
    %103 = arith.mulf %98, %102 : vector<8x32xf32>
    %104 = vector.extract_strided_slice %5 {offsets = [32, 0], sizes = [8, 128], strides = [1, 1]} : vector<128x128xf32> to vector<8x128xf32>
    %105 = arith.truncf %103 : vector<8x32xf32> to vector<8x32xbf16>
    %c0_35 = arith.constant 0 : index
    %c0_36 = arith.constant 0 : index
    %106 = vector.load %arg2[%c0_35, %c0_36] : memref<32x128xbf16, #tpu.memory_space<vmem>>, vector<32x128xbf16>
    %cst_37 = arith.constant dense<0.000000e+00> : vector<8x128xf32>
    %107 = tpu.matmul %105, %106, %cst_37 {dimension_numbers = #tpu.dot_dimension_numbers<[1], [0], [0], [1], [0, 0, 1, 1], [], []>} : vector<8x32xbf16>, vector<32x128xbf16>, vector<8x128xf32> -> vector<8x128xf32>
    %108 = arith.addf %104, %107 : vector<8x128xf32>
    %cst_38 = arith.constant 0.000000e+00 : f32
    %109 = vector.broadcast %cst_38 : f32 to vector<8x128xf32>
    %110 = arith.subf %109, %108 : vector<8x128xf32>
    %111 = math.exp %110 : vector<8x128xf32>
    %cst_39 = arith.constant 1.000000e+00 : f32
    %112 = vector.broadcast %cst_39 : f32 to vector<8x128xf32>
    %113 = arith.addf %112, %111 : vector<8x128xf32>
    %114 = tpu.reciprocal %113 {approx = true} : vector<8x128xf32> -> vector<8x128xf32>
    %115 = vector.extract_strided_slice %114 {offsets = [0, 0], sizes = [8, 32], strides = [1, 1]} : vector<8x128xf32> to vector<8x32xf32>
    %116 = vector.extract_strided_slice %114 {offsets = [0, 32], sizes = [8, 32], strides = [1, 1]} : vector<8x128xf32> to vector<8x32xf32>
    %117 = vector.extract_strided_slice %114 {offsets = [0, 64], sizes = [8, 32], strides = [1, 1]} : vector<8x128xf32> to vector<8x32xf32>
    %cst_40 = arith.constant 2.000000e+00 : f32
    %118 = vector.broadcast %cst_40 : f32 to vector<8x32xf32>
    %119 = arith.mulf %118, %117 : vector<8x32xf32>
    %cst_41 = arith.constant 1.000000e+00 : f32
    %120 = vector.broadcast %cst_41 : f32 to vector<8x32xf32>
    %121 = arith.subf %119, %120 : vector<8x32xf32>
    %122 = vector.extract_strided_slice %114 {offsets = [0, 96], sizes = [8, 32], strides = [1, 1]} : vector<8x128xf32> to vector<8x32xf32>
    %123 = arith.mulf %116, %101 : vector<8x32xf32>
    %124 = arith.mulf %115, %121 : vector<8x32xf32>
    %125 = arith.addf %123, %124 : vector<8x32xf32>
    %126 = math.tanh %125 : vector<8x32xf32>
    %127 = arith.mulf %122, %126 : vector<8x32xf32>
    %128 = vector.extract_strided_slice %5 {offsets = [40, 0], sizes = [8, 128], strides = [1, 1]} : vector<128x128xf32> to vector<8x128xf32>
    %129 = arith.truncf %127 : vector<8x32xf32> to vector<8x32xbf16>
    %c0_42 = arith.constant 0 : index
    %c0_43 = arith.constant 0 : index
    %130 = vector.load %arg2[%c0_42, %c0_43] : memref<32x128xbf16, #tpu.memory_space<vmem>>, vector<32x128xbf16>
    %cst_44 = arith.constant dense<0.000000e+00> : vector<8x128xf32>
    %131 = tpu.matmul %129, %130, %cst_44 {dimension_numbers = #tpu.dot_dimension_numbers<[1], [0], [0], [1], [0, 0, 1, 1], [], []>} : vector<8x32xbf16>, vector<32x128xbf16>, vector<8x128xf32> -> vector<8x128xf32>
    %132 = arith.addf %128, %131 : vector<8x128xf32>
    %cst_45 = arith.constant 0.000000e+00 : f32
    %133 = vector.broadcast %cst_45 : f32 to vector<8x128xf32>
    %134 = arith.subf %133, %132 : vector<8x128xf32>
    %135 = math.exp %134 : vector<8x128xf32>
    %cst_46 = arith.constant 1.000000e+00 : f32
    %136 = vector.broadcast %cst_46 : f32 to vector<8x128xf32>
    %137 = arith.addf %136, %135 : vector<8x128xf32>
    %138 = tpu.reciprocal %137 {approx = true} : vector<8x128xf32> -> vector<8x128xf32>
    %139 = vector.extract_strided_slice %138 {offsets = [0, 0], sizes = [8, 32], strides = [1, 1]} : vector<8x128xf32> to vector<8x32xf32>
    %140 = vector.extract_strided_slice %138 {offsets = [0, 32], sizes = [8, 32], strides = [1, 1]} : vector<8x128xf32> to vector<8x32xf32>
    %141 = vector.extract_strided_slice %138 {offsets = [0, 64], sizes = [8, 32], strides = [1, 1]} : vector<8x128xf32> to vector<8x32xf32>
    %cst_47 = arith.constant 2.000000e+00 : f32
    %142 = vector.broadcast %cst_47 : f32 to vector<8x32xf32>
    %143 = arith.mulf %142, %141 : vector<8x32xf32>
    %cst_48 = arith.constant 1.000000e+00 : f32
    %144 = vector.broadcast %cst_48 : f32 to vector<8x32xf32>
    %145 = arith.subf %143, %144 : vector<8x32xf32>
    %146 = vector.extract_strided_slice %138 {offsets = [0, 96], sizes = [8, 32], strides = [1, 1]} : vector<8x128xf32> to vector<8x32xf32>
    %147 = arith.mulf %140, %125 : vector<8x32xf32>
    %148 = arith.mulf %139, %145 : vector<8x32xf32>
    %149 = arith.addf %147, %148 : vector<8x32xf32>
    %150 = math.tanh %149 : vector<8x32xf32>
    %151 = arith.mulf %146, %150 : vector<8x32xf32>
    %152 = vector.extract_strided_slice %5 {offsets = [48, 0], sizes = [8, 128], strides = [1, 1]} : vector<128x128xf32> to vector<8x128xf32>
    %153 = arith.truncf %151 : vector<8x32xf32> to vector<8x32xbf16>
    %c0_49 = arith.constant 0 : index
    %c0_50 = arith.constant 0 : index
    %154 = vector.load %arg2[%c0_49, %c0_50] : memref<32x128xbf16, #tpu.memory_space<vmem>>, vector<32x128xbf16>
    %cst_51 = arith.constant dense<0.000000e+00> : vector<8x128xf32>
    %155 = tpu.matmul %153, %154, %cst_51 {dimension_numbers = #tpu.dot_dimension_numbers<[1], [0], [0], [1], [0, 0, 1, 1], [], []>} : vector<8x32xbf16>, vector<32x128xbf16>, vector<8x128xf32> -> vector<8x128xf32>
    %156 = arith.addf %152, %155 : vector<8x128xf32>
    %cst_52 = arith.constant 0.000000e+00 : f32
    %157 = vector.broadcast %cst_52 : f32 to vector<8x128xf32>
    %158 = arith.subf %157, %156 : vector<8x128xf32>
    %159 = math.exp %158 : vector<8x128xf32>
    %cst_53 = arith.constant 1.000000e+00 : f32
    %160 = vector.broadcast %cst_53 : f32 to vector<8x128xf32>
    %161 = arith.addf %160, %159 : vector<8x128xf32>
    %162 = tpu.reciprocal %161 {approx = true} : vector<8x128xf32> -> vector<8x128xf32>
    %163 = vector.extract_strided_slice %162 {offsets = [0, 0], sizes = [8, 32], strides = [1, 1]} : vector<8x128xf32> to vector<8x32xf32>
    %164 = vector.extract_strided_slice %162 {offsets = [0, 32], sizes = [8, 32], strides = [1, 1]} : vector<8x128xf32> to vector<8x32xf32>
    %165 = vector.extract_strided_slice %162 {offsets = [0, 64], sizes = [8, 32], strides = [1, 1]} : vector<8x128xf32> to vector<8x32xf32>
    %cst_54 = arith.constant 2.000000e+00 : f32
    %166 = vector.broadcast %cst_54 : f32 to vector<8x32xf32>
    %167 = arith.mulf %166, %165 : vector<8x32xf32>
    %cst_55 = arith.constant 1.000000e+00 : f32
    %168 = vector.broadcast %cst_55 : f32 to vector<8x32xf32>
    %169 = arith.subf %167, %168 : vector<8x32xf32>
    %170 = vector.extract_strided_slice %162 {offsets = [0, 96], sizes = [8, 32], strides = [1, 1]} : vector<8x128xf32> to vector<8x32xf32>
    %171 = arith.mulf %164, %149 : vector<8x32xf32>
    %172 = arith.mulf %163, %169 : vector<8x32xf32>
    %173 = arith.addf %171, %172 : vector<8x32xf32>
    %174 = math.tanh %173 : vector<8x32xf32>
    %175 = arith.mulf %170, %174 : vector<8x32xf32>
    %176 = vector.extract_strided_slice %5 {offsets = [56, 0], sizes = [8, 128], strides = [1, 1]} : vector<128x128xf32> to vector<8x128xf32>
    %177 = arith.truncf %175 : vector<8x32xf32> to vector<8x32xbf16>
    %c0_56 = arith.constant 0 : index
    %c0_57 = arith.constant 0 : index
    %178 = vector.load %arg2[%c0_56, %c0_57] : memref<32x128xbf16, #tpu.memory_space<vmem>>, vector<32x128xbf16>
    %cst_58 = arith.constant dense<0.000000e+00> : vector<8x128xf32>
    %179 = tpu.matmul %177, %178, %cst_58 {dimension_numbers = #tpu.dot_dimension_numbers<[1], [0], [0], [1], [0, 0, 1, 1], [], []>} : vector<8x32xbf16>, vector<32x128xbf16>, vector<8x128xf32> -> vector<8x128xf32>
    %180 = arith.addf %176, %179 : vector<8x128xf32>
    %cst_59 = arith.constant 0.000000e+00 : f32
    %181 = vector.broadcast %cst_59 : f32 to vector<8x128xf32>
    %182 = arith.subf %181, %180 : vector<8x128xf32>
    %183 = math.exp %182 : vector<8x128xf32>
    %cst_60 = arith.constant 1.000000e+00 : f32
    %184 = vector.broadcast %cst_60 : f32 to vector<8x128xf32>
    %185 = arith.addf %184, %183 : vector<8x128xf32>
    %186 = tpu.reciprocal %185 {approx = true} : vector<8x128xf32> -> vector<8x128xf32>
    %187 = vector.extract_strided_slice %186 {offsets = [0, 0], sizes = [8, 32], strides = [1, 1]} : vector<8x128xf32> to vector<8x32xf32>
    %188 = vector.extract_strided_slice %186 {offsets = [0, 32], sizes = [8, 32], strides = [1, 1]} : vector<8x128xf32> to vector<8x32xf32>
    %189 = vector.extract_strided_slice %186 {offsets = [0, 64], sizes = [8, 32], strides = [1, 1]} : vector<8x128xf32> to vector<8x32xf32>
    %cst_61 = arith.constant 2.000000e+00 : f32
    %190 = vector.broadcast %cst_61 : f32 to vector<8x32xf32>
    %191 = arith.mulf %190, %189 : vector<8x32xf32>
    %cst_62 = arith.constant 1.000000e+00 : f32
    %192 = vector.broadcast %cst_62 : f32 to vector<8x32xf32>
    %193 = arith.subf %191, %192 : vector<8x32xf32>
    %194 = vector.extract_strided_slice %186 {offsets = [0, 96], sizes = [8, 32], strides = [1, 1]} : vector<8x128xf32> to vector<8x32xf32>
    %195 = arith.mulf %188, %173 : vector<8x32xf32>
    %196 = arith.mulf %187, %193 : vector<8x32xf32>
    %197 = arith.addf %195, %196 : vector<8x32xf32>
    %198 = math.tanh %197 : vector<8x32xf32>
    %199 = arith.mulf %194, %198 : vector<8x32xf32>
    %200 = vector.extract_strided_slice %5 {offsets = [64, 0], sizes = [8, 128], strides = [1, 1]} : vector<128x128xf32> to vector<8x128xf32>
    %201 = arith.truncf %199 : vector<8x32xf32> to vector<8x32xbf16>
    %c0_63 = arith.constant 0 : index
    %c0_64 = arith.constant 0 : index
    %202 = vector.load %arg2[%c0_63, %c0_64] : memref<32x128xbf16, #tpu.memory_space<vmem>>, vector<32x128xbf16>
    %cst_65 = arith.constant dense<0.000000e+00> : vector<8x128xf32>
    %203 = tpu.matmul %201, %202, %cst_65 {dimension_numbers = #tpu.dot_dimension_numbers<[1], [0], [0], [1], [0, 0, 1, 1], [], []>} : vector<8x32xbf16>, vector<32x128xbf16>, vector<8x128xf32> -> vector<8x128xf32>
    %204 = arith.addf %200, %203 : vector<8x128xf32>
    %cst_66 = arith.constant 0.000000e+00 : f32
    %205 = vector.broadcast %cst_66 : f32 to vector<8x128xf32>
    %206 = arith.subf %205, %204 : vector<8x128xf32>
    %207 = math.exp %206 : vector<8x128xf32>
    %cst_67 = arith.constant 1.000000e+00 : f32
    %208 = vector.broadcast %cst_67 : f32 to vector<8x128xf32>
    %209 = arith.addf %208, %207 : vector<8x128xf32>
    %210 = tpu.reciprocal %209 {approx = true} : vector<8x128xf32> -> vector<8x128xf32>
    %211 = vector.extract_strided_slice %210 {offsets = [0, 0], sizes = [8, 32], strides = [1, 1]} : vector<8x128xf32> to vector<8x32xf32>
    %212 = vector.extract_strided_slice %210 {offsets = [0, 32], sizes = [8, 32], strides = [1, 1]} : vector<8x128xf32> to vector<8x32xf32>
    %213 = vector.extract_strided_slice %210 {offsets = [0, 64], sizes = [8, 32], strides = [1, 1]} : vector<8x128xf32> to vector<8x32xf32>
    %cst_68 = arith.constant 2.000000e+00 : f32
    %214 = vector.broadcast %cst_68 : f32 to vector<8x32xf32>
    %215 = arith.mulf %214, %213 : vector<8x32xf32>
    %cst_69 = arith.constant 1.000000e+00 : f32
    %216 = vector.broadcast %cst_69 : f32 to vector<8x32xf32>
    %217 = arith.subf %215, %216 : vector<8x32xf32>
    %218 = vector.extract_strided_slice %210 {offsets = [0, 96], sizes = [8, 32], strides = [1, 1]} : vector<8x128xf32> to vector<8x32xf32>
    %219 = arith.mulf %212, %197 : vector<8x32xf32>
    %220 = arith.mulf %211, %217 : vector<8x32xf32>
    %221 = arith.addf %219, %220 : vector<8x32xf32>
    %222 = math.tanh %221 : vector<8x32xf32>
    %223 = arith.mulf %218, %222 : vector<8x32xf32>
    %224 = vector.extract_strided_slice %5 {offsets = [72, 0], sizes = [8, 128], strides = [1, 1]} : vector<128x128xf32> to vector<8x128xf32>
    %225 = arith.truncf %223 : vector<8x32xf32> to vector<8x32xbf16>
    %c0_70 = arith.constant 0 : index
    %c0_71 = arith.constant 0 : index
    %226 = vector.load %arg2[%c0_70, %c0_71] : memref<32x128xbf16, #tpu.memory_space<vmem>>, vector<32x128xbf16>
    %cst_72 = arith.constant dense<0.000000e+00> : vector<8x128xf32>
    %227 = tpu.matmul %225, %226, %cst_72 {dimension_numbers = #tpu.dot_dimension_numbers<[1], [0], [0], [1], [0, 0, 1, 1], [], []>} : vector<8x32xbf16>, vector<32x128xbf16>, vector<8x128xf32> -> vector<8x128xf32>
    %228 = arith.addf %224, %227 : vector<8x128xf32>
    %cst_73 = arith.constant 0.000000e+00 : f32
    %229 = vector.broadcast %cst_73 : f32 to vector<8x128xf32>
    %230 = arith.subf %229, %228 : vector<8x128xf32>
    %231 = math.exp %230 : vector<8x128xf32>
    %cst_74 = arith.constant 1.000000e+00 : f32
    %232 = vector.broadcast %cst_74 : f32 to vector<8x128xf32>
    %233 = arith.addf %232, %231 : vector<8x128xf32>
    %234 = tpu.reciprocal %233 {approx = true} : vector<8x128xf32> -> vector<8x128xf32>
    %235 = vector.extract_strided_slice %234 {offsets = [0, 0], sizes = [8, 32], strides = [1, 1]} : vector<8x128xf32> to vector<8x32xf32>
    %236 = vector.extract_strided_slice %234 {offsets = [0, 32], sizes = [8, 32], strides = [1, 1]} : vector<8x128xf32> to vector<8x32xf32>
    %237 = vector.extract_strided_slice %234 {offsets = [0, 64], sizes = [8, 32], strides = [1, 1]} : vector<8x128xf32> to vector<8x32xf32>
    %cst_75 = arith.constant 2.000000e+00 : f32
    %238 = vector.broadcast %cst_75 : f32 to vector<8x32xf32>
    %239 = arith.mulf %238, %237 : vector<8x32xf32>
    %cst_76 = arith.constant 1.000000e+00 : f32
    %240 = vector.broadcast %cst_76 : f32 to vector<8x32xf32>
    %241 = arith.subf %239, %240 : vector<8x32xf32>
    %242 = vector.extract_strided_slice %234 {offsets = [0, 96], sizes = [8, 32], strides = [1, 1]} : vector<8x128xf32> to vector<8x32xf32>
    %243 = arith.mulf %236, %221 : vector<8x32xf32>
    %244 = arith.mulf %235, %241 : vector<8x32xf32>
    %245 = arith.addf %243, %244 : vector<8x32xf32>
    %246 = math.tanh %245 : vector<8x32xf32>
    %247 = arith.mulf %242, %246 : vector<8x32xf32>
    %248 = vector.extract_strided_slice %5 {offsets = [80, 0], sizes = [8, 128], strides = [1, 1]} : vector<128x128xf32> to vector<8x128xf32>
    %249 = arith.truncf %247 : vector<8x32xf32> to vector<8x32xbf16>
    %c0_77 = arith.constant 0 : index
    %c0_78 = arith.constant 0 : index
    %250 = vector.load %arg2[%c0_77, %c0_78] : memref<32x128xbf16, #tpu.memory_space<vmem>>, vector<32x128xbf16>
    %cst_79 = arith.constant dense<0.000000e+00> : vector<8x128xf32>
    %251 = tpu.matmul %249, %250, %cst_79 {dimension_numbers = #tpu.dot_dimension_numbers<[1], [0], [0], [1], [0, 0, 1, 1], [], []>} : vector<8x32xbf16>, vector<32x128xbf16>, vector<8x128xf32> -> vector<8x128xf32>
    %252 = arith.addf %248, %251 : vector<8x128xf32>
    %cst_80 = arith.constant 0.000000e+00 : f32
    %253 = vector.broadcast %cst_80 : f32 to vector<8x128xf32>
    %254 = arith.subf %253, %252 : vector<8x128xf32>
    %255 = math.exp %254 : vector<8x128xf32>
    %cst_81 = arith.constant 1.000000e+00 : f32
    %256 = vector.broadcast %cst_81 : f32 to vector<8x128xf32>
    %257 = arith.addf %256, %255 : vector<8x128xf32>
    %258 = tpu.reciprocal %257 {approx = true} : vector<8x128xf32> -> vector<8x128xf32>
    %259 = vector.extract_strided_slice %258 {offsets = [0, 0], sizes = [8, 32], strides = [1, 1]} : vector<8x128xf32> to vector<8x32xf32>
    %260 = vector.extract_strided_slice %258 {offsets = [0, 32], sizes = [8, 32], strides = [1, 1]} : vector<8x128xf32> to vector<8x32xf32>
    %261 = vector.extract_strided_slice %258 {offsets = [0, 64], sizes = [8, 32], strides = [1, 1]} : vector<8x128xf32> to vector<8x32xf32>
    %cst_82 = arith.constant 2.000000e+00 : f32
    %262 = vector.broadcast %cst_82 : f32 to vector<8x32xf32>
    %263 = arith.mulf %262, %261 : vector<8x32xf32>
    %cst_83 = arith.constant 1.000000e+00 : f32
    %264 = vector.broadcast %cst_83 : f32 to vector<8x32xf32>
    %265 = arith.subf %263, %264 : vector<8x32xf32>
    %266 = vector.extract_strided_slice %258 {offsets = [0, 96], sizes = [8, 32], strides = [1, 1]} : vector<8x128xf32> to vector<8x32xf32>
    %267 = arith.mulf %260, %245 : vector<8x32xf32>
    %268 = arith.mulf %259, %265 : vector<8x32xf32>
    %269 = arith.addf %267, %268 : vector<8x32xf32>
    %270 = math.tanh %269 : vector<8x32xf32>
    %271 = arith.mulf %266, %270 : vector<8x32xf32>
    %272 = vector.extract_strided_slice %5 {offsets = [88, 0], sizes = [8, 128], strides = [1, 1]} : vector<128x128xf32> to vector<8x128xf32>
    %273 = arith.truncf %271 : vector<8x32xf32> to vector<8x32xbf16>
    %c0_84 = arith.constant 0 : index
    %c0_85 = arith.constant 0 : index
    %274 = vector.load %arg2[%c0_84, %c0_85] : memref<32x128xbf16, #tpu.memory_space<vmem>>, vector<32x128xbf16>
    %cst_86 = arith.constant dense<0.000000e+00> : vector<8x128xf32>
    %275 = tpu.matmul %273, %274, %cst_86 {dimension_numbers = #tpu.dot_dimension_numbers<[1], [0], [0], [1], [0, 0, 1, 1], [], []>} : vector<8x32xbf16>, vector<32x128xbf16>, vector<8x128xf32> -> vector<8x128xf32>
    %276 = arith.addf %272, %275 : vector<8x128xf32>
    %cst_87 = arith.constant 0.000000e+00 : f32
    %277 = vector.broadcast %cst_87 : f32 to vector<8x128xf32>
    %278 = arith.subf %277, %276 : vector<8x128xf32>
    %279 = math.exp %278 : vector<8x128xf32>
    %cst_88 = arith.constant 1.000000e+00 : f32
    %280 = vector.broadcast %cst_88 : f32 to vector<8x128xf32>
    %281 = arith.addf %280, %279 : vector<8x128xf32>
    %282 = tpu.reciprocal %281 {approx = true} : vector<8x128xf32> -> vector<8x128xf32>
    %283 = vector.extract_strided_slice %282 {offsets = [0, 0], sizes = [8, 32], strides = [1, 1]} : vector<8x128xf32> to vector<8x32xf32>
    %284 = vector.extract_strided_slice %282 {offsets = [0, 32], sizes = [8, 32], strides = [1, 1]} : vector<8x128xf32> to vector<8x32xf32>
    %285 = vector.extract_strided_slice %282 {offsets = [0, 64], sizes = [8, 32], strides = [1, 1]} : vector<8x128xf32> to vector<8x32xf32>
    %cst_89 = arith.constant 2.000000e+00 : f32
    %286 = vector.broadcast %cst_89 : f32 to vector<8x32xf32>
    %287 = arith.mulf %286, %285 : vector<8x32xf32>
    %cst_90 = arith.constant 1.000000e+00 : f32
    %288 = vector.broadcast %cst_90 : f32 to vector<8x32xf32>
    %289 = arith.subf %287, %288 : vector<8x32xf32>
    %290 = vector.extract_strided_slice %282 {offsets = [0, 96], sizes = [8, 32], strides = [1, 1]} : vector<8x128xf32> to vector<8x32xf32>
    %291 = arith.mulf %284, %269 : vector<8x32xf32>
    %292 = arith.mulf %283, %289 : vector<8x32xf32>
    %293 = arith.addf %291, %292 : vector<8x32xf32>
    %294 = math.tanh %293 : vector<8x32xf32>
    %295 = arith.mulf %290, %294 : vector<8x32xf32>
    %296 = vector.extract_strided_slice %5 {offsets = [96, 0], sizes = [8, 128], strides = [1, 1]} : vector<128x128xf32> to vector<8x128xf32>
    %297 = arith.truncf %295 : vector<8x32xf32> to vector<8x32xbf16>
    %c0_91 = arith.constant 0 : index
    %c0_92 = arith.constant 0 : index
    %298 = vector.load %arg2[%c0_91, %c0_92] : memref<32x128xbf16, #tpu.memory_space<vmem>>, vector<32x128xbf16>
    %cst_93 = arith.constant dense<0.000000e+00> : vector<8x128xf32>
    %299 = tpu.matmul %297, %298, %cst_93 {dimension_numbers = #tpu.dot_dimension_numbers<[1], [0], [0], [1], [0, 0, 1, 1], [], []>} : vector<8x32xbf16>, vector<32x128xbf16>, vector<8x128xf32> -> vector<8x128xf32>
    %300 = arith.addf %296, %299 : vector<8x128xf32>
    %cst_94 = arith.constant 0.000000e+00 : f32
    %301 = vector.broadcast %cst_94 : f32 to vector<8x128xf32>
    %302 = arith.subf %301, %300 : vector<8x128xf32>
    %303 = math.exp %302 : vector<8x128xf32>
    %cst_95 = arith.constant 1.000000e+00 : f32
    %304 = vector.broadcast %cst_95 : f32 to vector<8x128xf32>
    %305 = arith.addf %304, %303 : vector<8x128xf32>
    %306 = tpu.reciprocal %305 {approx = true} : vector<8x128xf32> -> vector<8x128xf32>
    %307 = vector.extract_strided_slice %306 {offsets = [0, 0], sizes = [8, 32], strides = [1, 1]} : vector<8x128xf32> to vector<8x32xf32>
    %308 = vector.extract_strided_slice %306 {offsets = [0, 32], sizes = [8, 32], strides = [1, 1]} : vector<8x128xf32> to vector<8x32xf32>
    %309 = vector.extract_strided_slice %306 {offsets = [0, 64], sizes = [8, 32], strides = [1, 1]} : vector<8x128xf32> to vector<8x32xf32>
    %cst_96 = arith.constant 2.000000e+00 : f32
    %310 = vector.broadcast %cst_96 : f32 to vector<8x32xf32>
    %311 = arith.mulf %310, %309 : vector<8x32xf32>
    %cst_97 = arith.constant 1.000000e+00 : f32
    %312 = vector.broadcast %cst_97 : f32 to vector<8x32xf32>
    %313 = arith.subf %311, %312 : vector<8x32xf32>
    %314 = vector.extract_strided_slice %306 {offsets = [0, 96], sizes = [8, 32], strides = [1, 1]} : vector<8x128xf32> to vector<8x32xf32>
    %315 = arith.mulf %308, %293 : vector<8x32xf32>
    %316 = arith.mulf %307, %313 : vector<8x32xf32>
    %317 = arith.addf %315, %316 : vector<8x32xf32>
    %318 = math.tanh %317 : vector<8x32xf32>
    %319 = arith.mulf %314, %318 : vector<8x32xf32>
    %320 = vector.extract_strided_slice %5 {offsets = [104, 0], sizes = [8, 128], strides = [1, 1]} : vector<128x128xf32> to vector<8x128xf32>
    %321 = arith.truncf %319 : vector<8x32xf32> to vector<8x32xbf16>
    %c0_98 = arith.constant 0 : index
    %c0_99 = arith.constant 0 : index
    %322 = vector.load %arg2[%c0_98, %c0_99] : memref<32x128xbf16, #tpu.memory_space<vmem>>, vector<32x128xbf16>
    %cst_100 = arith.constant dense<0.000000e+00> : vector<8x128xf32>
    %323 = tpu.matmul %321, %322, %cst_100 {dimension_numbers = #tpu.dot_dimension_numbers<[1], [0], [0], [1], [0, 0, 1, 1], [], []>} : vector<8x32xbf16>, vector<32x128xbf16>, vector<8x128xf32> -> vector<8x128xf32>
    %324 = arith.addf %320, %323 : vector<8x128xf32>
    %cst_101 = arith.constant 0.000000e+00 : f32
    %325 = vector.broadcast %cst_101 : f32 to vector<8x128xf32>
    %326 = arith.subf %325, %324 : vector<8x128xf32>
    %327 = math.exp %326 : vector<8x128xf32>
    %cst_102 = arith.constant 1.000000e+00 : f32
    %328 = vector.broadcast %cst_102 : f32 to vector<8x128xf32>
    %329 = arith.addf %328, %327 : vector<8x128xf32>
    %330 = tpu.reciprocal %329 {approx = true} : vector<8x128xf32> -> vector<8x128xf32>
    %331 = vector.extract_strided_slice %330 {offsets = [0, 0], sizes = [8, 32], strides = [1, 1]} : vector<8x128xf32> to vector<8x32xf32>
    %332 = vector.extract_strided_slice %330 {offsets = [0, 32], sizes = [8, 32], strides = [1, 1]} : vector<8x128xf32> to vector<8x32xf32>
    %333 = vector.extract_strided_slice %330 {offsets = [0, 64], sizes = [8, 32], strides = [1, 1]} : vector<8x128xf32> to vector<8x32xf32>
    %cst_103 = arith.constant 2.000000e+00 : f32
    %334 = vector.broadcast %cst_103 : f32 to vector<8x32xf32>
    %335 = arith.mulf %334, %333 : vector<8x32xf32>
    %cst_104 = arith.constant 1.000000e+00 : f32
    %336 = vector.broadcast %cst_104 : f32 to vector<8x32xf32>
    %337 = arith.subf %335, %336 : vector<8x32xf32>
    %338 = vector.extract_strided_slice %330 {offsets = [0, 96], sizes = [8, 32], strides = [1, 1]} : vector<8x128xf32> to vector<8x32xf32>
    %339 = arith.mulf %332, %317 : vector<8x32xf32>
    %340 = arith.mulf %331, %337 : vector<8x32xf32>
    %341 = arith.addf %339, %340 : vector<8x32xf32>
    %342 = math.tanh %341 : vector<8x32xf32>
    %343 = arith.mulf %338, %342 : vector<8x32xf32>
    %344 = vector.extract_strided_slice %5 {offsets = [112, 0], sizes = [8, 128], strides = [1, 1]} : vector<128x128xf32> to vector<8x128xf32>
    %345 = arith.truncf %343 : vector<8x32xf32> to vector<8x32xbf16>
    %c0_105 = arith.constant 0 : index
    %c0_106 = arith.constant 0 : index
    %346 = vector.load %arg2[%c0_105, %c0_106] : memref<32x128xbf16, #tpu.memory_space<vmem>>, vector<32x128xbf16>
    %cst_107 = arith.constant dense<0.000000e+00> : vector<8x128xf32>
    %347 = tpu.matmul %345, %346, %cst_107 {dimension_numbers = #tpu.dot_dimension_numbers<[1], [0], [0], [1], [0, 0, 1, 1], [], []>} : vector<8x32xbf16>, vector<32x128xbf16>, vector<8x128xf32> -> vector<8x128xf32>
    %348 = arith.addf %344, %347 : vector<8x128xf32>
    %cst_108 = arith.constant 0.000000e+00 : f32
    %349 = vector.broadcast %cst_108 : f32 to vector<8x128xf32>
    %350 = arith.subf %349, %348 : vector<8x128xf32>
    %351 = math.exp %350 : vector<8x128xf32>
    %cst_109 = arith.constant 1.000000e+00 : f32
    %352 = vector.broadcast %cst_109 : f32 to vector<8x128xf32>
    %353 = arith.addf %352, %351 : vector<8x128xf32>
    %354 = tpu.reciprocal %353 {approx = true} : vector<8x128xf32> -> vector<8x128xf32>
    %355 = vector.extract_strided_slice %354 {offsets = [0, 0], sizes = [8, 32], strides = [1, 1]} : vector<8x128xf32> to vector<8x32xf32>
    %356 = vector.extract_strided_slice %354 {offsets = [0, 32], sizes = [8, 32], strides = [1, 1]} : vector<8x128xf32> to vector<8x32xf32>
    %357 = vector.extract_strided_slice %354 {offsets = [0, 64], sizes = [8, 32], strides = [1, 1]} : vector<8x128xf32> to vector<8x32xf32>
    %cst_110 = arith.constant 2.000000e+00 : f32
    %358 = vector.broadcast %cst_110 : f32 to vector<8x32xf32>
    %359 = arith.mulf %358, %357 : vector<8x32xf32>
    %cst_111 = arith.constant 1.000000e+00 : f32
    %360 = vector.broadcast %cst_111 : f32 to vector<8x32xf32>
    %361 = arith.subf %359, %360 : vector<8x32xf32>
    %362 = vector.extract_strided_slice %354 {offsets = [0, 96], sizes = [8, 32], strides = [1, 1]} : vector<8x128xf32> to vector<8x32xf32>
    %363 = arith.mulf %356, %341 : vector<8x32xf32>
    %364 = arith.mulf %355, %361 : vector<8x32xf32>
    %365 = arith.addf %363, %364 : vector<8x32xf32>
    %366 = math.tanh %365 : vector<8x32xf32>
    %367 = arith.mulf %362, %366 : vector<8x32xf32>
    %368 = vector.extract_strided_slice %5 {offsets = [120, 0], sizes = [8, 128], strides = [1, 1]} : vector<128x128xf32> to vector<8x128xf32>
    %369 = arith.truncf %367 : vector<8x32xf32> to vector<8x32xbf16>
    %c0_112 = arith.constant 0 : index
    %c0_113 = arith.constant 0 : index
    %370 = vector.load %arg2[%c0_112, %c0_113] : memref<32x128xbf16, #tpu.memory_space<vmem>>, vector<32x128xbf16>
    %cst_114 = arith.constant dense<0.000000e+00> : vector<8x128xf32>
    %371 = tpu.matmul %369, %370, %cst_114 {dimension_numbers = #tpu.dot_dimension_numbers<[1], [0], [0], [1], [0, 0, 1, 1], [], []>} : vector<8x32xbf16>, vector<32x128xbf16>, vector<8x128xf32> -> vector<8x128xf32>
    %372 = arith.addf %368, %371 : vector<8x128xf32>
    %cst_115 = arith.constant 0.000000e+00 : f32
    %373 = vector.broadcast %cst_115 : f32 to vector<8x128xf32>
    %374 = arith.subf %373, %372 : vector<8x128xf32>
    %375 = math.exp %374 : vector<8x128xf32>
    %cst_116 = arith.constant 1.000000e+00 : f32
    %376 = vector.broadcast %cst_116 : f32 to vector<8x128xf32>
    %377 = arith.addf %376, %375 : vector<8x128xf32>
    %378 = tpu.reciprocal %377 {approx = true} : vector<8x128xf32> -> vector<8x128xf32>
    %379 = vector.extract_strided_slice %378 {offsets = [0, 0], sizes = [8, 32], strides = [1, 1]} : vector<8x128xf32> to vector<8x32xf32>
    %380 = vector.extract_strided_slice %378 {offsets = [0, 32], sizes = [8, 32], strides = [1, 1]} : vector<8x128xf32> to vector<8x32xf32>
    %381 = vector.extract_strided_slice %378 {offsets = [0, 64], sizes = [8, 32], strides = [1, 1]} : vector<8x128xf32> to vector<8x32xf32>
    %cst_117 = arith.constant 2.000000e+00 : f32
    %382 = vector.broadcast %cst_117 : f32 to vector<8x32xf32>
    %383 = arith.mulf %382, %381 : vector<8x32xf32>
    %cst_118 = arith.constant 1.000000e+00 : f32
    %384 = vector.broadcast %cst_118 : f32 to vector<8x32xf32>
    %385 = arith.subf %383, %384 : vector<8x32xf32>
    %386 = vector.extract_strided_slice %378 {offsets = [0, 96], sizes = [8, 32], strides = [1, 1]} : vector<8x128xf32> to vector<8x32xf32>
    %387 = arith.mulf %380, %365 : vector<8x32xf32>
    %388 = arith.mulf %379, %385 : vector<8x32xf32>
    %389 = arith.addf %387, %388 : vector<8x32xf32>
    %390 = math.tanh %389 : vector<8x32xf32>
    %391 = arith.mulf %386, %390 : vector<8x32xf32>
    %392 = tpu.concatenate %31, %55, %79, %103, %127, %151, %175, %199, %223, %247, %271, %295, %319, %343, %367, %391 in 0 : vector<8x32xf32>, vector<8x32xf32>, vector<8x32xf32>, vector<8x32xf32>, vector<8x32xf32>, vector<8x32xf32>, vector<8x32xf32>, vector<8x32xf32>, vector<8x32xf32>, vector<8x32xf32>, vector<8x32xf32>, vector<8x32xf32>, vector<8x32xf32>, vector<8x32xf32>, vector<8x32xf32>, vector<8x32xf32> -> vector<128x32xf32>
    %393 = arith.truncf %392 : vector<128x32xf32> to vector<128x32xbf16>
    %c0_119 = arith.constant 0 : index
    %c0_120 = arith.constant 0 : index
    %394 = vector.load %arg4[%c0_119, %c0_120] : memref<32x32xbf16, #tpu.memory_space<vmem>>, vector<32x32xbf16>
    %cst_121 = arith.constant dense<0.000000e+00> : vector<128x32xf32>
    %395 = tpu.matmul %393, %394, %cst_121 {dimension_numbers = #tpu.dot_dimension_numbers<[1], [0], [0], [1], [0, 0, 1, 1], [], []>} : vector<128x32xbf16>, vector<32x32xbf16>, vector<128x32xf32> -> vector<128x32xf32>
    %c0_122 = arith.constant 0 : index
    %c0_123 = arith.constant 0 : index
    %396 = vector.load %arg5[%c0_122, %c0_123] : memref<1x32xf32, #tpu.memory_space<vmem>>, vector<1x32xf32>
    %397 = vector.broadcast %396 : vector<1x32xf32> to vector<128x32xf32>
    %398 = arith.addf %395, %397 : vector<128x32xf32>
    %cst_124 = arith.constant 0.000000e+00 : f32
    %399 = vector.broadcast %cst_124 : f32 to vector<128x32xf32>
    %400 = arith.maximumf %398, %399 : vector<128x32xf32>
    %c0_125 = arith.constant 0 : index
    %c0_126 = arith.constant 0 : index
    %401 = vector.load %arg6[%c0_125, %c0_126] : memref<128x32xf32, #tpu.memory_space<vmem>>, vector<128x32xf32>
    tpu.vector_store %arg6[%c0_125, %c0_126], %400 {strides = array<i32>} : memref<128x32xf32, #tpu.memory_space<vmem>>, vector<128x32xf32>,
    return
  }
}

</mosaic_0001>

<llo_original>
// kernel: variant_rnn_forward.1
$region0: #{variant_rnn_forward.1}
  #allocation0 [shape = 'u32[]', space=smem, size = 0x4, offset = 0x4, fixed_abs, tag = 'smem constant byte address 0x4 - core index']
  #allocation1 [shape = 'u32[144,128]{1,0:T(1,128)}', space=vmem, size = 0x12000, scoped, tag = 'internal scratch']
  %s0 = inlined_call_operand.vmem [shape: bf16[128,32], index: 0, kind: input, shape index: {}]
  %s1 = inlined_call_operand.vmem [shape: bf16[32,128], index: 1, kind: input, shape index: {}]
  %s2 = inlined_call_operand.vmem [shape: bf16[32,128], index: 2, kind: input, shape index: {}]
  %s3 = inlined_call_operand.vmem [shape: f32[1,128], index: 3, kind: input, shape index: {}]
  %s4 = inlined_call_operand.vmem [shape: bf16[32,32], index: 4, kind: input, shape index: {}]
  %s5 = inlined_call_operand.vmem [shape: f32[1,32], index: 5, kind: input, shape index: {}]
  %s6 = inlined_call_operand.vmem [shape: f32[128,32], index: 6, kind: output, shape index: {}]
  %s7 = sld [smem:[#allocation0]]
  $region34: #{variant_rnn_forward.1} parent=0
    _
  %s9 = ssub.s32 1, %s7
  %s10 = scalar_select 0, %s9, %s7
  // Predicated region
  $region2: #{variant_rnn_forward.1} parent=0 // pred_check
    _
  $region3: #{variant_rnn_forward.1} parent=0 // pred_check_branch
    %12 = sbr.rel (0) target = $region5
  $region4: #{variant_rnn_forward.1} parent=0 // pred_region
    _
  $region5: #{variant_rnn_forward.1} parent=0 // pred_fallthru
    _
  // Predicated region
  $region6: #{variant_rnn_forward.1} parent=0 // pred_check
    _
  $region7: #{variant_rnn_forward.1} parent=0 // pred_check_branch
    %14 = sbr.rel (0) target = $region9
  $region8: #{variant_rnn_forward.1} parent=0 // pred_region
    _
  $region9: #{variant_rnn_forward.1} parent=0 // pred_fallthru
    _
  // Predicated region
  $region10: #{variant_rnn_forward.1} parent=0 // pred_check
    _
  $region11: #{variant_rnn_forward.1} parent=0 // pred_check_branch
    %16 = sbr.rel (0) target = $region13
  $region12: #{variant_rnn_forward.1} parent=0 // pred_region
    _
  $region13: #{variant_rnn_forward.1} parent=0 // pred_fallthru
    _
  // Predicated region
  $region14: #{variant_rnn_forward.1} parent=0 // pred_check
    _
  $region15: #{variant_rnn_forward.1} parent=0 // pred_check_branch
    %18 = sbr.rel (0) target = $region17
  $region16: #{variant_rnn_forward.1} parent=0 // pred_region
    _
  $region17: #{variant_rnn_forward.1} parent=0 // pred_fallthru
    _
  // Predicated region
  $region18: #{variant_rnn_forward.1} parent=0 // pred_check
    _
  $region19: #{variant_rnn_forward.1} parent=0 // pred_check_branch
    %20 = sbr.rel (0) target = $region21
  $region20: #{variant_rnn_forward.1} parent=0 // pred_region
    _
  $region21: #{variant_rnn_forward.1} parent=0 // pred_fallthru
    _
  // Predicated region
  $region22: #{variant_rnn_forward.1} parent=0 // pred_check
    _
  $region23: #{variant_rnn_forward.1} parent=0 // pred_check_branch
    %22 = sbr.rel (0) target = $region25
  $region24: #{variant_rnn_forward.1} parent=0 // pred_region
    _
  $region25: #{variant_rnn_forward.1} parent=0 // pred_fallthru
    _
  %v24 = vld [vmem:[%s0] sm:$0xf]
  %v25 = vld [vmem:[%s0 + $0x4] sm:$0xf]
  %v26 = vld [vmem:[%s0 + $0x8] sm:$0xf]
  %v27 = vld [vmem:[%s0 + $0xc] sm:$0xf]
  %v28 = vld [vmem:[%s0 + $0x10] sm:$0xf]
  %v29 = vld [vmem:[%s0 + $0x14] sm:$0xf]
  %v30 = vld [vmem:[%s0 + $0x18] sm:$0xf]
  %v31 = vld [vmem:[%s0 + $0x1c] sm:$0xf]
  %v32 = vld [vmem:[%s0 + $0x20] sm:$0xf]
  %v33 = vld [vmem:[%s0 + $0x24] sm:$0xf]
  %v34 = vld [vmem:[%s0 + $0x28] sm:$0xf]
  %v35 = vld [vmem:[%s0 + $0x2c] sm:$0xf]
  %v36 = vld [vmem:[%s0 + $0x30] sm:$0xf]
  %v37 = vld [vmem:[%s0 + $0x34] sm:$0xf]
  %v38 = vld [vmem:[%s0 + $0x38] sm:$0xf]
  %v39 = vld [vmem:[%s0 + $0x3c] sm:$0xf]
  %v40 = vld [vmem:[%s1] sm:$0xf]
  %v41 = vld [vmem:[%s1 + $0x4] sm:$0xf]
  %v42 = vld [vmem:[%s1 + $0x8] sm:$0xf]
  %v43 = vld [vmem:[%s1 + $0xc] sm:$0xf]
  %v44 = vld [vmem:[%s3] sm:$0x1]
  %v46 = vlaneseq
  %v47 = vshrl.u32 %v46, 7
  %v48 = vsub.s32 0, %v47
  %v49 = vrot.slane %v44, %v48
  %v67 = vunpack.c.l.b16 %v24
  %v68 = vunpack.c.l.b16 %v25
  %v69 = vunpack.c.l.b16 %v26
  %v70 = vunpack.c.l.b16 %v27
  %v71 = vunpack.c.l.b16 %v28
  %v72 = vunpack.c.l.b16 %v29
  %v73 = vunpack.c.l.b16 %v30
  %v74 = vunpack.c.l.b16 %v31
  %v75 = vunpack.c.l.b16 %v32
  %v76 = vunpack.c.l.b16 %v33
  %v77 = vunpack.c.l.b16 %v34
  %v78 = vunpack.c.l.b16 %v35
  %v79 = vunpack.c.l.b16 %v36
  %v80 = vunpack.c.l.b16 %v37
  %v81 = vunpack.c.l.b16 %v38
  %v82 = vunpack.c.l.b16 %v39
  %v83 = vpack.c.b16 %v68, %v67
  %v84 = vpack.c.b16 %v70, %v69
  %v85 = vpack.c.b16 %v72, %v71
  %v86 = vpack.c.b16 %v74, %v73
  %v87 = vpack.c.b16 %v76, %v75
  %v88 = vpack.c.b16 %v78, %v77
  %v89 = vpack.c.b16 %v80, %v79
  %v90 = vpack.c.b16 %v82, %v81
  %v95 = vunpack.c.l.b16 %v40
  %v96 = vunpack.c.l.b16 %v41
  %v97 = vunpack.c.l.b16 %v42
  %v98 = vunpack.c.l.b16 %v43
  %v99 = vpack.c.b16 %v96, %v95
  %v100 = vpack.c.b16 %v98, %v97
  %vm103 = vcmask 261120
  %v105 = vsel %vm103, %v83, 0
  %v108 = vsel %vm103, %v84, 0
  %v111 = vsel %vm103, %v85, 0
  %v114 = vsel %vm103, %v86, 0
  %v117 = vsel %vm103, %v87, 0
  %v120 = vsel %vm103, %v88, 0
  %v123 = vsel %vm103, %v89, 0
  %v126 = vsel %vm103, %v90, 0
  %128 = vmatprep.subr.bf16.mxu0 0
  %129 = vmatpush1.bf16.msra.mxu0 0
  %130 = vmatprep.subr.bf16.mxu0 0
  %131 = vmatpush1.bf16.msra.mxu0 0
  %132 = vmatprep.subr.bf16.mxu0 0
  %133 = vmatpush1.bf16.msra.mxu0 0
  %134 = vmatprep.subr.bf16.mxu0 0
  %135 = vmatpush1.bf16.msra.mxu0 0
  %136 = vmatprep.subr.bf16.mxu0 0
  %137 = vmatpush1.bf16.msra.mxu0 0
  %138 = vmatprep.subr.bf16.mxu0 0
  %139 = vmatpush1.bf16.msra.mxu0 0
  %140 = vmatprep.subr.bf16.mxu0 0
  %141 = vmatpush1.bf16.msra.mxu0 %v100
  %142 = vmatprep.subr.bf16.mxu0 0
  %143 = vmatpush1.bf16.msra.mxu0 %v99
  %144 = vmatprep.subr.bf16.mxu0 0
  %145 = vmatpush2.bf16.msra.mxu0 0
  %146 = vmatprep.subr.bf16.mxu0 0
  %147 = vmatpush2.bf16.msra.mxu0 0
  %148 = vmatprep.subr.bf16.mxu0 0
  %149 = vmatpush2.bf16.msra.mxu0 0
  %150 = vmatprep.subr.bf16.mxu0 0
  %151 = vmatpush2.bf16.msra.mxu0 0
  %152 = vmatprep.subr.bf16.mxu0 0
  %153 = vmatpush2.bf16.msra.mxu0 0
  %154 = vmatprep.subr.bf16.mxu0 0
  %155 = vmatpush2.bf16.msra.mxu0 0
  %156 = vmatprep.subr.bf16.mxu0 0
  %157 = vmatpush2.bf16.msra.mxu0 0
  %158 = vmatprep.subr.bf16.mxu0 0
  %159 = vmatpush2.bf16.msra.mxu0 0
  %160 = vmatprep.mubr.bf16.mxu0 0
  %161 = vmatmul.mubr.bf16.gmra.mxu0 %v105
  %v162 = vpop.f32.mrf.mxu0
  %v163 = vadd.f32 %v49, %v162
  %v164 = vpop.f32.mrf.mxu0
  %v165 = vpop.f32.mrf.mxu0
  %v166 = vadd.f32 %v49, %v165
  %v167 = vpop.f32.mrf.mxu0
  %168 = vmatprep.mubr.bf16.mxu0 0
  %169 = vmatmul.mubr.bf16.gmra.mxu0 %v108
  %v170 = vpop.f32.mrf.mxu0
  %v171 = vadd.f32 %v49, %v170
  %v172 = vpop.f32.mrf.mxu0
  %v173 = vpop.f32.mrf.mxu0
  %v174 = vadd.f32 %v49, %v173
  %v175 = vpop.f32.mrf.mxu0
  %176 = vmatprep.mubr.bf16.mxu0 0
  %177 = vmatmul.mubr.bf16.gmra.mxu0 %v111
  %v178 = vpop.f32.mrf.mxu0
  %v179 = vadd.f32 %v49, %v178
  %v180 = vpop.f32.mrf.mxu0
  %v181 = vpop.f32.mrf.mxu0
  %v182 = vadd.f32 %v49, %v181
  %v183 = vpop.f32.mrf.mxu0
  %184 = vmatprep.mubr.bf16.mxu0 0
  %185 = vmatmul.mubr.bf16.gmra.mxu0 %v114
  %v186 = vpop.f32.mrf.mxu0
  %v187 = vadd.f32 %v49, %v186
  %v188 = vpop.f32.mrf.mxu0
  %v189 = vpop.f32.mrf.mxu0
  %v190 = vadd.f32 %v49, %v189
  %v191 = vpop.f32.mrf.mxu0
  %192 = vmatprep.mubr.bf16.mxu0 0
  %193 = vmatmul.mubr.bf16.gmra.mxu0 %v117
  %v194 = vpop.f32.mrf.mxu0
  %v195 = vadd.f32 %v49, %v194
  %v196 = vpop.f32.mrf.mxu0
  %v197 = vpop.f32.mrf.mxu0
  %v198 = vadd.f32 %v49, %v197
  %v199 = vpop.f32.mrf.mxu0
  %200 = vmatprep.mubr.bf16.mxu0 0
  %201 = vmatmul.mubr.bf16.gmra.mxu0 %v120
  %v202 = vpop.f32.mrf.mxu0
  %v203 = vadd.f32 %v49, %v202
  %v204 = vpop.f32.mrf.mxu0
  %v205 = vpop.f32.mrf.mxu0
  %v206 = vadd.f32 %v49, %v205
  %v207 = vpop.f32.mrf.mxu0
  %208 = vmatprep.mubr.bf16.mxu0 0
  %209 = vmatmul.mubr.bf16.gmra.mxu0 %v123
  %v210 = vpop.f32.mrf.mxu0
  %v211 = vadd.f32 %v49, %v210
  %v212 = vpop.f32.mrf.mxu0
  %v213 = vpop.f32.mrf.mxu0
  %v214 = vadd.f32 %v49, %v213
  %v215 = vpop.f32.mrf.mxu0
  %216 = vmatprep.mubr.bf16.mxu0 0
  %217 = vmatmul.mubr.bf16.gmra.mxu0 %v126
  %v218 = vpop.f32.mrf.mxu0
  %v219 = vadd.f32 %v49, %v218
  %v220 = vpop.f32.mrf.mxu0
  %v221 = vpop.f32.mrf.mxu0
  %v222 = vadd.f32 %v49, %v221
  %v223 = vpop.f32.mrf.mxu0
  %224 = vdwg.mxu0
  %v225 = vld [vmem:[%s2] sm:$0xf]
  %v226 = vld [vmem:[%s2 + $0x4] sm:$0xf]
  %v227 = vld [vmem:[%s2 + $0x8] sm:$0xf]
  %v228 = vld [vmem:[%s2 + $0xc] sm:$0xf]
  %v233 = vunpack.c.l.b16 %v225
  %v234 = vunpack.c.l.b16 %v226
  %v235 = vunpack.c.l.b16 %v227
  %v236 = vunpack.c.l.b16 %v228
  %v237 = vpack.c.b16 %v234, %v233
  %v238 = vpack.c.b16 %v236, %v235
  %v242 = vsel %vm103, 0, 0
  %244 = vmatprep.subr.bf16.mxu0 0
  %245 = vmatpush1.bf16.msra.mxu0 0
  %246 = vmatprep.subr.bf16.mxu0 0
  %247 = vmatpush1.bf16.msra.mxu0 0
  %248 = vmatprep.subr.bf16.mxu0 0
  %249 = vmatpush1.bf16.msra.mxu0 0
  %250 = vmatprep.subr.bf16.mxu0 0
  %251 = vmatpush1.bf16.msra.mxu0 0
  %252 = vmatprep.subr.bf16.mxu0 0
  %253 = vmatpush1.bf16.msra.mxu0 0
  %254 = vmatprep.subr.bf16.mxu0 0
  %255 = vmatpush1.bf16.msra.mxu0 0
  %256 = vmatprep.subr.bf16.mxu0 0
  %257 = vmatpush1.bf16.msra.mxu0 %v238
  %258 = vmatprep.subr.bf16.mxu0 0
  %259 = vmatpush1.bf16.msra.mxu0 %v237
  %260 = vmatprep.subr.bf16.mxu0 0
  %261 = vmatpush2.bf16.msra.mxu0 0
  %262 = vmatprep.subr.bf16.mxu0 0
  %263 = vmatpush2.bf16.msra.mxu0 0
  %264 = vmatprep.subr.bf16.mxu0 0
  %265 = vmatpush2.bf16.msra.mxu0 0
  %266 = vmatprep.subr.bf16.mxu0 0
  %267 = vmatpush2.bf16.msra.mxu0 0
  %268 = vmatprep.subr.bf16.mxu0 0
  %269 = vmatpush2.bf16.msra.mxu0 0
  %270 = vmatprep.subr.bf16.mxu0 0
  %271 = vmatpush2.bf16.msra.mxu0 0
  %272 = vmatprep.subr.bf16.mxu0 0
  %273 = vmatpush2.bf16.msra.mxu0 0
  %274 = vmatprep.subr.bf16.mxu0 0
  %275 = vmatpush2.bf16.msra.mxu0 0
  %276 = vmatprep.mubr.bf16.mxu0 0
  %277 = vmatmul.mubr.bf16.gmra.mxu0 %v242
  %v278 = vpop.f32.mrf.mxu0
  %v279 = vadd.f32 0.0, %v278
  %v280 = vpop.f32.mrf.mxu0
  %v281 = vpop.f32.mrf.mxu0
  %v282 = vpop.f32.mrf.mxu0
  %283 = vdwg.mxu0
  %v284 = vadd.f32 %v163, %v279
  %v285 = vsub.f32 0.0, %v284
  %v286 = vmul.f32 %v285, 1.442695
  %v287 = vpow.pop %v286
  %v288 = vadd.f32 %v287, 1.0
  %v289 = vrcp.pop %v288
  %v290 = vmul.f32 %v289, 2.0
  %v291 = vsub.f32 %v290, 1.0
  %v292 = vmul.f32 %v289, 0.0
  %294 = vrot.lane.b32.xlu0 %v291, 64
  %v295 = vpop.permute.xlu0 %294
  %v297 = vmul.f32 %v289, %v295
  %299 = vrot.lane.b32.xlu0 %v297, 32
  %v300 = vpop.permute.xlu0 %299
  %v302 = vadd.f32 %v292, %v300
  %v303 = vtanh.pop %v302
  %305 = vrot.lane.b32.xlu0 %v303, 64
  %v306 = vpop.permute.xlu0 %305
  %v308 = vmul.f32 %v289, %v306
  %v309 = vpack.c.bf16 %v308, %v308
  %311 = vrot.lane.b32.xlu0 %v309, 32
  %v312 = vpop.permute.xlu0 %311
  %v314 = vsel %vm103, %v312, 0
  %316 = vmatprep.subr.bf16.mxu0 0
  %317 = vmatpush1.bf16.msra.mxu0 0
  %318 = vmatprep.subr.bf16.mxu0 0
  %319 = vmatpush1.bf16.msra.mxu0 0
  %320 = vmatprep.subr.bf16.mxu0 0
  %321 = vmatpush1.bf16.msra.mxu0 0
  %322 = vmatprep.subr.bf16.mxu0 0
  %323 = vmatpush1.bf16.msra.mxu0 0
  %324 = vmatprep.subr.bf16.mxu0 0
  %325 = vmatpush1.bf16.msra.mxu0 0
  %326 = vmatprep.subr.bf16.mxu0 0
  %327 = vmatpush1.bf16.msra.mxu0 0
  %328 = vmatprep.subr.bf16.mxu0 0
  %329 = vmatpush1.bf16.msra.mxu0 %v238
  %330 = vmatprep.subr.bf16.mxu0 0
  %331 = vmatpush1.bf16.msra.mxu0 %v237
  %332 = vmatprep.subr.bf16.mxu0 0
  %333 = vmatpush2.bf16.msra.mxu0 0
  %334 = vmatprep.subr.bf16.mxu0 0
  %335 = vmatpush2.bf16.msra.mxu0 0
  %336 = vmatprep.subr.bf16.mxu0 0
  %337 = vmatpush2.bf16.msra.mxu0 0
  %338 = vmatprep.subr.bf16.mxu0 0
  %339 = vmatpush2.bf16.msra.mxu0 0
  %340 = vmatprep.subr.bf16.mxu0 0
  %341 = vmatpush2.bf16.msra.mxu0 0
  %342 = vmatprep.subr.bf16.mxu0 0
  %343 = vmatpush2.bf16.msra.mxu0 0
  %344 = vmatprep.subr.bf16.mxu0 0
  %345 = vmatpush2.bf16.msra.mxu0 0
  %346 = vmatprep.subr.bf16.mxu0 0
  %347 = vmatpush2.bf16.msra.mxu0 0
  %348 = vmatprep.mubr.bf16.mxu0 0
  %349 = vmatmul.mubr.bf16.gmra.mxu0 %v314
  %v350 = vpop.f32.mrf.mxu0
  %v351 = vadd.f32 0.0, %v350
  %v352 = vpop.f32.mrf.mxu0
  %v353 = vpop.f32.mrf.mxu0
  %v354 = vpop.f32.mrf.mxu0
  %355 = vdwg.mxu0
  %v356 = vadd.f32 %v166, %v351
  %v357 = vsub.f32 0.0, %v356
  %v358 = vmul.f32 %v357, 1.442695
  %v359 = vpow.pop %v358
  %v360 = vadd.f32 %v359, 1.0
  %v361 = vrcp.pop %v360
  %v362 = vmul.f32 %v361, 2.0
  %v363 = vsub.f32 %v362, 1.0
  %v364 = vmul.f32 %v361, %v302
  %366 = vrot.lane.b32.xlu0 %v363, 64
  %v367 = vpop.permute.xlu0 %366
  %v369 = vmul.f32 %v361, %v367
  %371 = vrot.lane.b32.xlu0 %v369, 32
  %v372 = vpop.permute.xlu0 %371
  %v374 = vadd.f32 %v364, %v372
  %v375 = vtanh.pop %v374
  %377 = vrot.lane.b32.xlu0 %v375, 64
  %v378 = vpop.permute.xlu0 %377
  %v380 = vmul.f32 %v361, %v378
  %v381 = vpack.c.bf16 %v380, %v380
  %383 = vrot.lane.b32.xlu0 %v381, 32
  %v384 = vpop.permute.xlu0 %383
  %v386 = vsel %vm103, %v384, 0
  %388 = vmatprep.subr.bf16.mxu0 0
  %389 = vmatpush1.bf16.msra.mxu0 0
  %390 = vmatprep.subr.bf16.mxu0 0
  %391 = vmatpush1.bf16.msra.mxu0 0
  %392 = vmatprep.subr.bf16.mxu0 0
  %393 = vmatpush1.bf16.msra.mxu0 0
  %394 = vmatprep.subr.bf16.mxu0 0
  %395 = vmatpush1.bf16.msra.mxu0 0
  %396 = vmatprep.subr.bf16.mxu0 0
  %397 = vmatpush1.bf16.msra.mxu0 0
  %398 = vmatprep.subr.bf16.mxu0 0
  %399 = vmatpush1.bf16.msra.mxu0 0
  %400 = vmatprep.subr.bf16.mxu0 0
  %401 = vmatpush1.bf16.msra.mxu0 %v238
  %402 = vmatprep.subr.bf16.mxu0 0
  %403 = vmatpush1.bf16.msra.mxu0 %v237
  %404 = vmatprep.subr.bf16.mxu0 0
  %405 = vmatpush2.bf16.msra.mxu0 0
  %406 = vmatprep.subr.bf16.mxu0 0
  %407 = vmatpush2.bf16.msra.mxu0 0
  %408 = vmatprep.subr.bf16.mxu0 0
  %409 = vmatpush2.bf16.msra.mxu0 0
  %410 = vmatprep.subr.bf16.mxu0 0
  %411 = vmatpush2.bf16.msra.mxu0 0
  %412 = vmatprep.subr.bf16.mxu0 0
  %413 = vmatpush2.bf16.msra.mxu0 0
  %414 = vmatprep.subr.bf16.mxu0 0
  %415 = vmatpush2.bf16.msra.mxu0 0
  %416 = vmatprep.subr.bf16.mxu0 0
  %417 = vmatpush2.bf16.msra.mxu0 0
  %418 = vmatprep.subr.bf16.mxu0 0
  %419 = vmatpush2.bf16.msra.mxu0 0
  %420 = vmatprep.mubr.bf16.mxu0 0
  %421 = vmatmul.mubr.bf16.gmra.mxu0 %v386
  %v422 = vpop.f32.mrf.mxu0
  %v423 = vadd.f32 0.0, %v422
  %v424 = vpop.f32.mrf.mxu0
  %v425 = vpop.f32.mrf.mxu0
  %v426 = vpop.f32.mrf.mxu0
  %427 = vdwg.mxu0
  %v428 = vadd.f32 %v171, %v423
  %v429 = vsub.f32 0.0, %v428
  %v430 = vmul.f32 %v429, 1.442695
  %v431 = vpow.pop %v430
  %v432 = vadd.f32 %v431, 1.0
  %v433 = vrcp.pop %v432
  %v434 = vmul.f32 %v433, 2.0
  %v435 = vsub.f32 %v434, 1.0
  %v436 = vmul.f32 %v433, %v374
  %438 = vrot.lane.b32.xlu0 %v435, 64
  %v439 = vpop.permute.xlu0 %438
  %v441 = vmul.f32 %v433, %v439
  %443 = vrot.lane.b32.xlu0 %v441, 32
  %v444 = vpop.permute.xlu0 %443
  %v446 = vadd.f32 %v436, %v444
  %v447 = vtanh.pop %v446
  %449 = vrot.lane.b32.xlu0 %v447, 64
  %v450 = vpop.permute.xlu0 %449
  %v452 = vmul.f32 %v433, %v450
  %v453 = vpack.c.bf16 %v452, %v452
  %455 = vrot.lane.b32.xlu0 %v453, 32
  %v456 = vpop.permute.xlu0 %455
  %v458 = vsel %vm103, %v456, 0
  %460 = vmatprep.subr.bf16.mxu0 0
  %461 = vmatpush1.bf16.msra.mxu0 0
  %462 = vmatprep.subr.bf16.mxu0 0
  %463 = vmatpush1.bf16.msra.mxu0 0
  %464 = vmatprep.subr.bf16.mxu0 0
  %465 = vmatpush1.bf16.msra.mxu0 0
  %466 = vmatprep.subr.bf16.mxu0 0
  %467 = vmatpush1.bf16.msra.mxu0 0
  %468 = vmatprep.subr.bf16.mxu0 0
  %469 = vmatpush1.bf16.msra.mxu0 0
  %470 = vmatprep.subr.bf16.mxu0 0
  %471 = vmatpush1.bf16.msra.mxu0 0
  %472 = vmatprep.subr.bf16.mxu0 0
  %473 = vmatpush1.bf16.msra.mxu0 %v238
  %474 = vmatprep.subr.bf16.mxu0 0
  %475 = vmatpush1.bf16.msra.mxu0 %v237
  %476 = vmatprep.subr.bf16.mxu0 0
  %477 = vmatpush2.bf16.msra.mxu0 0
  %478 = vmatprep.subr.bf16.mxu0 0
  %479 = vmatpush2.bf16.msra.mxu0 0
  %480 = vmatprep.subr.bf16.mxu0 0
  %481 = vmatpush2.bf16.msra.mxu0 0
  %482 = vmatprep.subr.bf16.mxu0 0
  %483 = vmatpush2.bf16.msra.mxu0 0
  %484 = vmatprep.subr.bf16.mxu0 0
  %485 = vmatpush2.bf16.msra.mxu0 0
  %486 = vmatprep.subr.bf16.mxu0 0
  %487 = vmatpush2.bf16.msra.mxu0 0
  %488 = vmatprep.subr.bf16.mxu0 0
  %489 = vmatpush2.bf16.msra.mxu0 0
  %490 = vmatprep.subr.bf16.mxu0 0
  %491 = vmatpush2.bf16.msra.mxu0 0
  %492 = vmatprep.mubr.bf16.mxu0 0
  %493 = vmatmul.mubr.bf16.gmra.mxu0 %v458
  %v494 = vpop.f32.mrf.mxu0
  %v495 = vadd.f32 0.0, %v494
  %v496 = vpop.f32.mrf.mxu0
  %v497 = vpop.f32.mrf.mxu0
  %v498 = vpop.f32.mrf.mxu0
  %499 = vdwg.mxu0
  %v500 = vadd.f32 %v174, %v495
  %v501 = vsub.f32 0.0, %v500
  %v502 = vmul.f32 %v501, 1.442695
  %v503 = vpow.pop %v502
  %v504 = vadd.f32 %v503, 1.0
  %v505 = vrcp.pop %v504
  %v506 = vmul.f32 %v505, 2.0
  %v507 = vsub.f32 %v506, 1.0
  %v508 = vmul.f32 %v505, %v446
  %510 = vrot.lane.b32.xlu0 %v507, 64
  %v511 = vpop.permute.xlu0 %510
  %v513 = vmul.f32 %v505, %v511
  %515 = vrot.lane.b32.xlu0 %v513, 32
  %v516 = vpop.permute.xlu0 %515
  %v518 = vadd.f32 %v508, %v516
  %v519 = vtanh.pop %v518
  %521 = vrot.lane.b32.xlu0 %v519, 64
  %v522 = vpop.permute.xlu0 %521
  %v524 = vmul.f32 %v505, %v522
  %v525 = vpack.c.bf16 %v524, %v524
  %527 = vrot.lane.b32.xlu0 %v525, 32
  %v528 = vpop.permute.xlu0 %527
  %v530 = vsel %vm103, %v528, 0
  %532 = vmatprep.subr.bf16.mxu0 0
  %533 = vmatpush1.bf16.msra.mxu0 0
  %534 = vmatprep.subr.bf16.mxu0 0
  %535 = vmatpush1.bf16.msra.mxu0 0
  %536 = vmatprep.subr.bf16.mxu0 0
  %537 = vmatpush1.bf16.msra.mxu0 0
  %538 = vmatprep.subr.bf16.mxu0 0
  %539 = vmatpush1.bf16.msra.mxu0 0
  %540 = vmatprep.subr.bf16.mxu0 0
  %541 = vmatpush1.bf16.msra.mxu0 0
  %542 = vmatprep.subr.bf16.mxu0 0
  %543 = vmatpush1.bf16.msra.mxu0 0
  %544 = vmatprep.subr.bf16.mxu0 0
  %545 = vmatpush1.bf16.msra.mxu0 %v238
  %546 = vmatprep.subr.bf16.mxu0 0
  %547 = vmatpush1.bf16.msra.mxu0 %v237
  %548 = vmatprep.subr.bf16.mxu0 0
  %549 = vmatpush2.bf16.msra.mxu0 0
  %550 = vmatprep.subr.bf16.mxu0 0
  %551 = vmatpush2.bf16.msra.mxu0 0
  %552 = vmatprep.subr.bf16.mxu0 0
  %553 = vmatpush2.bf16.msra.mxu0 0
  %554 = vmatprep.subr.bf16.mxu0 0
  %555 = vmatpush2.bf16.msra.mxu0 0
  %556 = vmatprep.subr.bf16.mxu0 0
  %557 = vmatpush2.bf16.msra.mxu0 0
  %558 = vmatprep.subr.bf16.mxu0 0
  %559 = vmatpush2.bf16.msra.mxu0 0
  %560 = vmatprep.subr.bf16.mxu0 0
  %561 = vmatpush2.bf16.msra.mxu0 0
  %562 = vmatprep.subr.bf16.mxu0 0
  %563 = vmatpush2.bf16.msra.mxu0 0
  %564 = vmatprep.mubr.bf16.mxu0 0
  %565 = vmatmul.mubr.bf16.gmra.mxu0 %v530
  %v566 = vpop.f32.mrf.mxu0
  %v567 = vadd.f32 0.0, %v566
  %v568 = vpop.f32.mrf.mxu0
  %v569 = vpop.f32.mrf.mxu0
  %v570 = vpop.f32.mrf.mxu0
  %571 = vdwg.mxu0
  %v572 = vadd.f32 %v179, %v567
  %v573 = vsub.f32 0.0, %v572
  %v574 = vmul.f32 %v573, 1.442695
  %v575 = vpow.pop %v574
  %v576 = vadd.f32 %v575, 1.0
  %v577 = vrcp.pop %v576
  %v578 = vmul.f32 %v577, 2.0
  %v579 = vsub.f32 %v578, 1.0
  %v580 = vmul.f32 %v577, %v518
  %582 = vrot.lane.b32.xlu0 %v579, 64
  %v583 = vpop.permute.xlu0 %582
  %v585 = vmul.f32 %v577, %v583
  %587 = vrot.lane.b32.xlu0 %v585, 32
  %v588 = vpop.permute.xlu0 %587
  %v590 = vadd.f32 %v580, %v588
  %v591 = vtanh.pop %v590
  %593 = vrot.lane.b32.xlu0 %v591, 64
  %v594 = vpop.permute.xlu0 %593
  %v596 = vmul.f32 %v577, %v594
  %v597 = vpack.c.bf16 %v596, %v596
  %599 = vrot.lane.b32.xlu0 %v597, 32
  %v600 = vpop.permute.xlu0 %599
  %v602 = vsel %vm103, %v600, 0
  %604 = vmatprep.subr.bf16.mxu0 0
  %605 = vmatpush1.bf16.msra.mxu0 0
  %606 = vmatprep.subr.bf16.mxu0 0
  %607 = vmatpush1.bf16.msra.mxu0 0
  %608 = vmatprep.subr.bf16.mxu0 0
  %609 = vmatpush1.bf16.msra.mxu0 0
  %610 = vmatprep.subr.bf16.mxu0 0
  %611 = vmatpush1.bf16.msra.mxu0 0
  %612 = vmatprep.subr.bf16.mxu0 0
  %613 = vmatpush1.bf16.msra.mxu0 0
  %614 = vmatprep.subr.bf16.mxu0 0
  %615 = vmatpush1.bf16.msra.mxu0 0
  %616 = vmatprep.subr.bf16.mxu0 0
  %617 = vmatpush1.bf16.msra.mxu0 %v238
  %618 = vmatprep.subr.bf16.mxu0 0
  %619 = vmatpush1.bf16.msra.mxu0 %v237
  %620 = vmatprep.subr.bf16.mxu0 0
  %621 = vmatpush2.bf16.msra.mxu0 0
  %622 = vmatprep.subr.bf16.mxu0 0
  %623 = vmatpush2.bf16.msra.mxu0 0
  %624 = vmatprep.subr.bf16.mxu0 0
  %625 = vmatpush2.bf16.msra.mxu0 0
  %626 = vmatprep.subr.bf16.mxu0 0
  %627 = vmatpush2.bf16.msra.mxu0 0
  %628 = vmatprep.subr.bf16.mxu0 0
  %629 = vmatpush2.bf16.msra.mxu0 0
  %630 = vmatprep.subr.bf16.mxu0 0
  %631 = vmatpush2.bf16.msra.mxu0 0
  %632 = vmatprep.subr.bf16.mxu0 0
  %633 = vmatpush2.bf16.msra.mxu0 0
  %634 = vmatprep.subr.bf16.mxu0 0
  %635 = vmatpush2.bf16.msra.mxu0 0
  %636 = vmatprep.mubr.bf16.mxu0 0
  %637 = vmatmul.mubr.bf16.gmra.mxu0 %v602
  %v638 = vpop.f32.mrf.mxu0
  %v639 = vadd.f32 0.0, %v638
  %v640 = vpop.f32.mrf.mxu0
  %v641 = vpop.f32.mrf.mxu0
  %v642 = vpop.f32.mrf.mxu0
  %643 = vdwg.mxu0
  %v644 = vadd.f32 %v182, %v639
  %v645 = vsub.f32 0.0, %v644
  %v646 = vmul.f32 %v645, 1.442695
  %v647 = vpow.pop %v646
  %v648 = vadd.f32 %v647, 1.0
  %v649 = vrcp.pop %v648
  %v650 = vmul.f32 %v649, 2.0
  %v651 = vsub.f32 %v650, 1.0
  %v652 = vmul.f32 %v649, %v590
  %654 = vrot.lane.b32.xlu0 %v651, 64
  %v655 = vpop.permute.xlu0 %654
  %v657 = vmul.f32 %v649, %v655
  %659 = vrot.lane.b32.xlu0 %v657, 32
  %v660 = vpop.permute.xlu0 %659
  %v662 = vadd.f32 %v652, %v660
  %v663 = vtanh.pop %v662
  %665 = vrot.lane.b32.xlu0 %v663, 64
  %v666 = vpop.permute.xlu0 %665
  %v668 = vmul.f32 %v649, %v666
  %v669 = vpack.c.bf16 %v668, %v668
  %671 = vrot.lane.b32.xlu0 %v669, 32
  %v672 = vpop.permute.xlu0 %671
  %v674 = vsel %vm103, %v672, 0
  %676 = vmatprep.subr.bf16.mxu0 0
  %677 = vmatpush1.bf16.msra.mxu0 0
  %678 = vmatprep.subr.bf16.mxu0 0
  %679 = vmatpush1.bf16.msra.mxu0 0
  %680 = vmatprep.subr.bf16.mxu0 0
  %681 = vmatpush1.bf16.msra.mxu0 0
  %682 = vmatprep.subr.bf16.mxu0 0
  %683 = vmatpush1.bf16.msra.mxu0 0
  %684 = vmatprep.subr.bf16.mxu0 0
  %685 = vmatpush1.bf16.msra.mxu0 0
  %686 = vmatprep.subr.bf16.mxu0 0
  %687 = vmatpush1.bf16.msra.mxu0 0
  %688 = vmatprep.subr.bf16.mxu0 0
  %689 = vmatpush1.bf16.msra.mxu0 %v238
  %690 = vmatprep.subr.bf16.mxu0 0
  %691 = vmatpush1.bf16.msra.mxu0 %v237
  %692 = vmatprep.subr.bf16.mxu0 0
  %693 = vmatpush2.bf16.msra.mxu0 0
  %694 = vmatprep.subr.bf16.mxu0 0
  %695 = vmatpush2.bf16.msra.mxu0 0
  %696 = vmatprep.subr.bf16.mxu0 0
  %697 = vmatpush2.bf16.msra.mxu0 0
  %698 = vmatprep.subr.bf16.mxu0 0
  %699 = vmatpush2.bf16.msra.mxu0 0
  %700 = vmatprep.subr.bf16.mxu0 0
  %701 = vmatpush2.bf16.msra.mxu0 0
  %702 = vmatprep.subr.bf16.mxu0 0
  %703 = vmatpush2.bf16.msra.mxu0 0
  %704 = vmatprep.subr.bf16.mxu0 0
  %705 = vmatpush2.bf16.msra.mxu0 0
  %706 = vmatprep.subr.bf16.mxu0 0
  %707 = vmatpush2.bf16.msra.mxu0 0
  %708 = vmatprep.mubr.bf16.mxu0 0
  %709 = vmatmul.mubr.bf16.gmra.mxu0 %v674
  %v710 = vpop.f32.mrf.mxu0
  %v711 = vadd.f32 0.0, %v710
  %v712 = vpop.f32.mrf.mxu0
  %v713 = vpop.f32.mrf.mxu0
  %v714 = vpop.f32.mrf.mxu0
  %715 = vdwg.mxu0
  %v716 = vadd.f32 %v187, %v711
  %v717 = vsub.f32 0.0, %v716
  %v718 = vmul.f32 %v717, 1.442695
  %v719 = vpow.pop %v718
  %v720 = vadd.f32 %v719, 1.0
  %v721 = vrcp.pop %v720
  %v722 = vmul.f32 %v721, 2.0
  %v723 = vsub.f32 %v722, 1.0
  %v724 = vmul.f32 %v721, %v662
  %726 = vrot.lane.b32.xlu0 %v723, 64
  %v727 = vpop.permute.xlu0 %726
  %v729 = vmul.f32 %v721, %v727
  %731 = vrot.lane.b32.xlu0 %v729, 32
  %v732 = vpop.permute.xlu0 %731
  %v734 = vadd.f32 %v724, %v732
  %v735 = vtanh.pop %v734
  %737 = vrot.lane.b32.xlu0 %v735, 64
  %v738 = vpop.permute.xlu0 %737
  %v740 = vmul.f32 %v721, %v738
  %v741 = vpack.c.bf16 %v740, %v740
  %743 = vrot.lane.b32.xlu0 %v741, 32
  %v744 = vpop.permute.xlu0 %743
  %v746 = vsel %vm103, %v744, 0
  %748 = vmatprep.subr.bf16.mxu0 0
  %749 = vmatpush1.bf16.msra.mxu0 0
  %750 = vmatprep.subr.bf16.mxu0 0
  %751 = vmatpush1.bf16.msra.mxu0 0
  %752 = vmatprep.subr.bf16.mxu0 0
  %753 = vmatpush1.bf16.msra.mxu0 0
  %754 = vmatprep.subr.bf16.mxu0 0
  %755 = vmatpush1.bf16.msra.mxu0 0
  %756 = vmatprep.subr.bf16.mxu0 0
  %757 = vmatpush1.bf16.msra.mxu0 0
  %758 = vmatprep.subr.bf16.mxu0 0
  %759 = vmatpush1.bf16.msra.mxu0 0
  %760 = vmatprep.subr.bf16.mxu0 0
  %761 = vmatpush1.bf16.msra.mxu0 %v238
  %762 = vmatprep.subr.bf16.mxu0 0
  %763 = vmatpush1.bf16.msra.mxu0 %v237
  %764 = vmatprep.subr.bf16.mxu0 0
  %765 = vmatpush2.bf16.msra.mxu0 0
  %766 = vmatprep.subr.bf16.mxu0 0
  %767 = vmatpush2.bf16.msra.mxu0 0
  %768 = vmatprep.subr.bf16.mxu0 0
  %769 = vmatpush2.bf16.msra.mxu0 0
  %770 = vmatprep.subr.bf16.mxu0 0
  %771 = vmatpush2.bf16.msra.mxu0 0
  %772 = vmatprep.subr.bf16.mxu0 0
  %773 = vmatpush2.bf16.msra.mxu0 0
  %774 = vmatprep.subr.bf16.mxu0 0
  %775 = vmatpush2.bf16.msra.mxu0 0
  %776 = vmatprep.subr.bf16.mxu0 0
  %777 = vmatpush2.bf16.msra.mxu0 0
  %778 = vmatprep.subr.bf16.mxu0 0
  %779 = vmatpush2.bf16.msra.mxu0 0
  %780 = vmatprep.mubr.bf16.mxu0 0
  %781 = vmatmul.mubr.bf16.gmra.mxu0 %v746
  %v782 = vpop.f32.mrf.mxu0
  %v783 = vadd.f32 0.0, %v782
  %v784 = vpop.f32.mrf.mxu0
  %v785 = vpop.f32.mrf.mxu0
  %v786 = vpop.f32.mrf.mxu0
  %787 = vdwg.mxu0
  %v788 = vadd.f32 %v190, %v783
  %v789 = vsub.f32 0.0, %v788
  %v790 = vmul.f32 %v789, 1.442695
  %v791 = vpow.pop %v790
  %v792 = vadd.f32 %v791, 1.0
  %v793 = vrcp.pop %v792
  %v794 = vmul.f32 %v793, 2.0
  %v795 = vsub.f32 %v794, 1.0
  %v796 = vmul.f32 %v793, %v734
  %798 = vrot.lane.b32.xlu0 %v795, 64
  %v799 = vpop.permute.xlu0 %798
  %v801 = vmul.f32 %v793, %v799
  %803 = vrot.lane.b32.xlu0 %v801, 32
  %v804 = vpop.permute.xlu0 %803
  %v806 = vadd.f32 %v796, %v804
  %v807 = vtanh.pop %v806
  %809 = vrot.lane.b32.xlu0 %v807, 64
  %v810 = vpop.permute.xlu0 %809
  %v812 = vmul.f32 %v793, %v810
  %v813 = vpack.c.bf16 %v812, %v812
  %815 = vrot.lane.b32.xlu0 %v813, 32
  %v816 = vpop.permute.xlu0 %815
  %v818 = vsel %vm103, %v816, 0
  %820 = vmatprep.subr.bf16.mxu0 0
  %821 = vmatpush1.bf16.msra.mxu0 0
  %822 = vmatprep.subr.bf16.mxu0 0
  %823 = vmatpush1.bf16.msra.mxu0 0
  %824 = vmatprep.subr.bf16.mxu0 0
  %825 = vmatpush1.bf16.msra.mxu0 0
  %826 = vmatprep.subr.bf16.mxu0 0
  %827 = vmatpush1.bf16.msra.mxu0 0
  %828 = vmatprep.subr.bf16.mxu0 0
  %829 = vmatpush1.bf16.msra.mxu0 0
  %830 = vmatprep.subr.bf16.mxu0 0
  %831 = vmatpush1.bf16.msra.mxu0 0
  %832 = vmatprep.subr.bf16.mxu0 0
  %833 = vmatpush1.bf16.msra.mxu0 %v238
  %834 = vmatprep.subr.bf16.mxu0 0
  %835 = vmatpush1.bf16.msra.mxu0 %v237
  %836 = vmatprep.subr.bf16.mxu0 0
  %837 = vmatpush2.bf16.msra.mxu0 0
  %838 = vmatprep.subr.bf16.mxu0 0
  %839 = vmatpush2.bf16.msra.mxu0 0
  %840 = vmatprep.subr.bf16.mxu0 0
  %841 = vmatpush2.bf16.msra.mxu0 0
  %842 = vmatprep.subr.bf16.mxu0 0
  %843 = vmatpush2.bf16.msra.mxu0 0
  %844 = vmatprep.subr.bf16.mxu0 0
  %845 = vmatpush2.bf16.msra.mxu0 0
  %846 = vmatprep.subr.bf16.mxu0 0
  %847 = vmatpush2.bf16.msra.mxu0 0
  %848 = vmatprep.subr.bf16.mxu0 0
  %849 = vmatpush2.bf16.msra.mxu0 0
  %850 = vmatprep.subr.bf16.mxu0 0
  %851 = vmatpush2.bf16.msra.mxu0 0
  %852 = vmatprep.mubr.bf16.mxu0 0
  %853 = vmatmul.mubr.bf16.gmra.mxu0 %v818
  %v854 = vpop.f32.mrf.mxu0
  %v855 = vadd.f32 0.0, %v854
  %v856 = vpop.f32.mrf.mxu0
  %v857 = vpop.f32.mrf.mxu0
  %v858 = vpop.f32.mrf.mxu0
  %859 = vdwg.mxu0
  %v860 = vadd.f32 %v195, %v855
  %v861 = vsub.f32 0.0, %v860
  %v862 = vmul.f32 %v861, 1.442695
  %v863 = vpow.pop %v862
  %v864 = vadd.f32 %v863, 1.0
  %v865 = vrcp.pop %v864
  %v866 = vmul.f32 %v865, 2.0
  %v867 = vsub.f32 %v866, 1.0
  %v868 = vmul.f32 %v865, %v806
  %870 = vrot.lane.b32.xlu0 %v867, 64
  %v871 = vpop.permute.xlu0 %870
  %v873 = vmul.f32 %v865, %v871
  %875 = vrot.lane.b32.xlu0 %v873, 32
  %v876 = vpop.permute.xlu0 %875
  %v878 = vadd.f32 %v868, %v876
  %v879 = vtanh.pop %v878
  %881 = vrot.lane.b32.xlu0 %v879, 64
  %v882 = vpop.permute.xlu0 %881
  %v884 = vmul.f32 %v865, %v882
  %v885 = vpack.c.bf16 %v884, %v884
  %887 = vrot.lane.b32.xlu0 %v885, 32
  %v888 = vpop.permute.xlu0 %887
  %v890 = vsel %vm103, %v888, 0
  %892 = vmatprep.subr.bf16.mxu0 0
  %893 = vmatpush1.bf16.msra.mxu0 0
  %894 = vmatprep.subr.bf16.mxu0 0
  %895 = vmatpush1.bf16.msra.mxu0 0
  %896 = vmatprep.subr.bf16.mxu0 0
  %897 = vmatpush1.bf16.msra.mxu0 0
  %898 = vmatprep.subr.bf16.mxu0 0
  %899 = vmatpush1.bf16.msra.mxu0 0
  %900 = vmatprep.subr.bf16.mxu0 0
  %901 = vmatpush1.bf16.msra.mxu0 0
  %902 = vmatprep.subr.bf16.mxu0 0
  %903 = vmatpush1.bf16.msra.mxu0 0
  %904 = vmatprep.subr.bf16.mxu0 0
  %905 = vmatpush1.bf16.msra.mxu0 %v238
  %906 = vmatprep.subr.bf16.mxu0 0
  %907 = vmatpush1.bf16.msra.mxu0 %v237
  %908 = vmatprep.subr.bf16.mxu0 0
  %909 = vmatpush2.bf16.msra.mxu0 0
  %910 = vmatprep.subr.bf16.mxu0 0
  %911 = vmatpush2.bf16.msra.mxu0 0
  %912 = vmatprep.subr.bf16.mxu0 0
  %913 = vmatpush2.bf16.msra.mxu0 0
  %914 = vmatprep.subr.bf16.mxu0 0
  %915 = vmatpush2.bf16.msra.mxu0 0
  %916 = vmatprep.subr.bf16.mxu0 0
  %917 = vmatpush2.bf16.msra.mxu0 0
  %918 = vmatprep.subr.bf16.mxu0 0
  %919 = vmatpush2.bf16.msra.mxu0 0
  %920 = vmatprep.subr.bf16.mxu0 0
  %921 = vmatpush2.bf16.msra.mxu0 0
  %922 = vmatprep.subr.bf16.mxu0 0
  %923 = vmatpush2.bf16.msra.mxu0 0
  %924 = vmatprep.mubr.bf16.mxu0 0
  %925 = vmatmul.mubr.bf16.gmra.mxu0 %v890
  %v926 = vpop.f32.mrf.mxu0
  %v927 = vadd.f32 0.0, %v926
  %v928 = vpop.f32.mrf.mxu0
  %v929 = vpop.f32.mrf.mxu0
  %v930 = vpop.f32.mrf.mxu0
  %931 = vdwg.mxu0
  %v932 = vadd.f32 %v198, %v927
  %v933 = vsub.f32 0.0, %v932
  %v934 = vmul.f32 %v933, 1.442695
  %v935 = vpow.pop %v934
  %v936 = vadd.f32 %v935, 1.0
  %v937 = vrcp.pop %v936
  %v938 = vmul.f32 %v937, 2.0
  %v939 = vsub.f32 %v938, 1.0
  %v940 = vmul.f32 %v937, %v878
  %942 = vrot.lane.b32.xlu0 %v939, 64
  %v943 = vpop.permute.xlu0 %942
  %v945 = vmul.f32 %v937, %v943
  %947 = vrot.lane.b32.xlu0 %v945, 32
  %v948 = vpop.permute.xlu0 %947
  %v950 = vadd.f32 %v940, %v948
  %v951 = vtanh.pop %v950
  %953 = vrot.lane.b32.xlu0 %v951, 64
  %v954 = vpop.permute.xlu0 %953
  %v956 = vmul.f32 %v937, %v954
  %v957 = vpack.c.bf16 %v956, %v956
  %959 = vrot.lane.b32.xlu0 %v957, 32
  %v960 = vpop.permute.xlu0 %959
  %v962 = vsel %vm103, %v960, 0
  %964 = vmatprep.subr.bf16.mxu0 0
  %965 = vmatpush1.bf16.msra.mxu0 0
  %966 = vmatprep.subr.bf16.mxu0 0
  %967 = vmatpush1.bf16.msra.mxu0 0
  %968 = vmatprep.subr.bf16.mxu0 0
  %969 = vmatpush1.bf16.msra.mxu0 0
  %970 = vmatprep.subr.bf16.mxu0 0
  %971 = vmatpush1.bf16.msra.mxu0 0
  %972 = vmatprep.subr.bf16.mxu0 0
  %973 = vmatpush1.bf16.msra.mxu0 0
  %974 = vmatprep.subr.bf16.mxu0 0
  %975 = vmatpush1.bf16.msra.mxu0 0
  %976 = vmatprep.subr.bf16.mxu0 0
  %977 = vmatpush1.bf16.msra.mxu0 %v238
  %978 = vmatprep.subr.bf16.mxu0 0
  %979 = vmatpush1.bf16.msra.mxu0 %v237
  %980 = vmatprep.subr.bf16.mxu0 0
  %981 = vmatpush2.bf16.msra.mxu0 0
  %982 = vmatprep.subr.bf16.mxu0 0
  %983 = vmatpush2.bf16.msra.mxu0 0
  %984 = vmatprep.subr.bf16.mxu0 0
  %985 = vmatpush2.bf16.msra.mxu0 0
  %986 = vmatprep.subr.bf16.mxu0 0
  %987 = vmatpush2.bf16.msra.mxu0 0
  %988 = vmatprep.subr.bf16.mxu0 0
  %989 = vmatpush2.bf16.msra.mxu0 0
  %990 = vmatprep.subr.bf16.mxu0 0
  %991 = vmatpush2.bf16.msra.mxu0 0
  %992 = vmatprep.subr.bf16.mxu0 0
  %993 = vmatpush2.bf16.msra.mxu0 0
  %994 = vmatprep.subr.bf16.mxu0 0
  %995 = vmatpush2.bf16.msra.mxu0 0
  %996 = vmatprep.mubr.bf16.mxu0 0
  %997 = vmatmul.mubr.bf16.gmra.mxu0 %v962
  %v998 = vpop.f32.mrf.mxu0
  %v999 = vadd.f32 0.0, %v998
  %v1000 = vpop.f32.mrf.mxu0
  %v1001 = vpop.f32.mrf.mxu0
  %v1002 = vpop.f32.mrf.mxu0
  %1003 = vdwg.mxu0
  %v1004 = vadd.f32 %v203, %v999
  %v1005 = vsub.f32 0.0, %v1004
  %v1006 = vmul.f32 %v1005, 1.442695
  %v1007 = vpow.pop %v1006
  %v1008 = vadd.f32 %v1007, 1.0
  %v1009 = vrcp.pop %v1008
  %v1010 = vmul.f32 %v1009, 2.0
  %v1011 = vsub.f32 %v1010, 1.0
  %v1012 = vmul.f32 %v1009, %v950
  %1014 = vrot.lane.b32.xlu0 %v1011, 64
  %v1015 = vpop.permute.xlu0 %1014
  %v1017 = vmul.f32 %v1009, %v1015
  %1019 = vrot.lane.b32.xlu0 %v1017, 32
  %v1020 = vpop.permute.xlu0 %1019
  %v1022 = vadd.f32 %v1012, %v1020
  %v1023 = vtanh.pop %v1022
  %1025 = vrot.lane.b32.xlu0 %v1023, 64
  %v1026 = vpop.permute.xlu0 %1025
  %v1028 = vmul.f32 %v1009, %v1026
  %v1029 = vpack.c.bf16 %v1028, %v1028
  %1031 = vrot.lane.b32.xlu0 %v1029, 32
  %v1032 = vpop.permute.xlu0 %1031
  %v1034 = vsel %vm103, %v1032, 0
  %1036 = vmatprep.subr.bf16.mxu0 0
  %1037 = vmatpush1.bf16.msra.mxu0 0
  %1038 = vmatprep.subr.bf16.mxu0 0
  %1039 = vmatpush1.bf16.msra.mxu0 0
  %1040 = vmatprep.subr.bf16.mxu0 0
  %1041 = vmatpush1.bf16.msra.mxu0 0
  %1042 = vmatprep.subr.bf16.mxu0 0
  %1043 = vmatpush1.bf16.msra.mxu0 0
  %1044 = vmatprep.subr.bf16.mxu0 0
  %1045 = vmatpush1.bf16.msra.mxu0 0
  %1046 = vmatprep.subr.bf16.mxu0 0
  %1047 = vmatpush1.bf16.msra.mxu0 0
  %1048 = vmatprep.subr.bf16.mxu0 0
  %1049 = vmatpush1.bf16.msra.mxu0 %v238
  %1050 = vmatprep.subr.bf16.mxu0 0
  %1051 = vmatpush1.bf16.msra.mxu0 %v237
  %1052 = vmatprep.subr.bf16.mxu0 0
  %1053 = vmatpush2.bf16.msra.mxu0 0
  %1054 = vmatprep.subr.bf16.mxu0 0
  %1055 = vmatpush2.bf16.msra.mxu0 0
  %1056 = vmatprep.subr.bf16.mxu0 0
  %1057 = vmatpush2.bf16.msra.mxu0 0
  %1058 = vmatprep.subr.bf16.mxu0 0
  %1059 = vmatpush2.bf16.msra.mxu0 0
  %1060 = vmatprep.subr.bf16.mxu0 0
  %1061 = vmatpush2.bf16.msra.mxu0 0
  %1062 = vmatprep.subr.bf16.mxu0 0
  %1063 = vmatpush2.bf16.msra.mxu0 0
  %1064 = vmatprep.subr.bf16.mxu0 0
  %1065 = vmatpush2.bf16.msra.mxu0 0
  %1066 = vmatprep.subr.bf16.mxu0 0
  %1067 = vmatpush2.bf16.msra.mxu0 0
  %1068 = vmatprep.mubr.bf16.mxu0 0
  %1069 = vmatmul.mubr.bf16.gmra.mxu0 %v1034
  %v1070 = vpop.f32.mrf.mxu0
  %v1071 = vadd.f32 0.0, %v1070
  %v1072 = vpop.f32.mrf.mxu0
  %v1073 = vpop.f32.mrf.mxu0
  %v1074 = vpop.f32.mrf.mxu0
  %1075 = vdwg.mxu0
  %v1076 = vadd.f32 %v206, %v1071
  %v1077 = vsub.f32 0.0, %v1076
  %v1078 = vmul.f32 %v1077, 1.442695
  %v1079 = vpow.pop %v1078
  %v1080 = vadd.f32 %v1079, 1.0
  %v1081 = vrcp.pop %v1080
  %v1082 = vmul.f32 %v1081, 2.0
  %v1083 = vsub.f32 %v1082, 1.0
  %v1084 = vmul.f32 %v1081, %v1022
  %1086 = vrot.lane.b32.xlu0 %v1083, 64
  %v1087 = vpop.permute.xlu0 %1086
  %v1089 = vmul.f32 %v1081, %v1087
  %1091 = vrot.lane.b32.xlu0 %v1089, 32
  %v1092 = vpop.permute.xlu0 %1091
  %v1094 = vadd.f32 %v1084, %v1092
  %v1095 = vtanh.pop %v1094
  %1097 = vrot.lane.b32.xlu0 %v1095, 64
  %v1098 = vpop.permute.xlu0 %1097
  %v1100 = vmul.f32 %v1081, %v1098
  %v1101 = vpack.c.bf16 %v1100, %v1100
  %1103 = vrot.lane.b32.xlu0 %v1101, 32
  %v1104 = vpop.permute.xlu0 %1103
  %v1106 = vsel %vm103, %v1104, 0
  %1108 = vmatprep.subr.bf16.mxu0 0
  %1109 = vmatpush1.bf16.msra.mxu0 0
  %1110 = vmatprep.subr.bf16.mxu0 0
  %1111 = vmatpush1.bf16.msra.mxu0 0
  %1112 = vmatprep.subr.bf16.mxu0 0
  %1113 = vmatpush1.bf16.msra.mxu0 0
  %1114 = vmatprep.subr.bf16.mxu0 0
  %1115 = vmatpush1.bf16.msra.mxu0 0
  %1116 = vmatprep.subr.bf16.mxu0 0
  %1117 = vmatpush1.bf16.msra.mxu0 0
  %1118 = vmatprep.subr.bf16.mxu0 0
  %1119 = vmatpush1.bf16.msra.mxu0 0
  %1120 = vmatprep.subr.bf16.mxu0 0
  %1121 = vmatpush1.bf16.msra.mxu0 %v238
  %1122 = vmatprep.subr.bf16.mxu0 0
  %1123 = vmatpush1.bf16.msra.mxu0 %v237
  %1124 = vmatprep.subr.bf16.mxu0 0
  %1125 = vmatpush2.bf16.msra.mxu0 0
  %1126 = vmatprep.subr.bf16.mxu0 0
  %1127 = vmatpush2.bf16.msra.mxu0 0
  %1128 = vmatprep.subr.bf16.mxu0 0
  %1129 = vmatpush2.bf16.msra.mxu0 0
  %1130 = vmatprep.subr.bf16.mxu0 0
  %1131 = vmatpush2.bf16.msra.mxu0 0
  %1132 = vmatprep.subr.bf16.mxu0 0
  %1133 = vmatpush2.bf16.msra.mxu0 0
  %1134 = vmatprep.subr.bf16.mxu0 0
  %1135 = vmatpush2.bf16.msra.mxu0 0
  %1136 = vmatprep.subr.bf16.mxu0 0
  %1137 = vmatpush2.bf16.msra.mxu0 0
  %1138 = vmatprep.subr.bf16.mxu0 0
  %1139 = vmatpush2.bf16.msra.mxu0 0
  %1140 = vmatprep.mubr.bf16.mxu0 0
  %1141 = vmatmul.mubr.bf16.gmra.mxu0 %v1106
  %v1142 = vpop.f32.mrf.mxu0
  %v1143 = vadd.f32 0.0, %v1142
  %v1144 = vpop.f32.mrf.mxu0
  %v1145 = vpop.f32.mrf.mxu0
  %v1146 = vpop.f32.mrf.mxu0
  %1147 = vdwg.mxu0
  %v1148 = vadd.f32 %v211, %v1143
  %v1149 = vsub.f32 0.0, %v1148
  %v1150 = vmul.f32 %v1149, 1.442695
  %v1151 = vpow.pop %v1150
  %v1152 = vadd.f32 %v1151, 1.0
  %v1153 = vrcp.pop %v1152
  %v1154 = vmul.f32 %v1153, 2.0
  %v1155 = vsub.f32 %v1154, 1.0
  %v1156 = vmul.f32 %v1153, %v1094
  %1158 = vrot.lane.b32.xlu0 %v1155, 64
  %v1159 = vpop.permute.xlu0 %1158
  %v1161 = vmul.f32 %v1153, %v1159
  %1163 = vrot.lane.b32.xlu0 %v1161, 32
  %v1164 = vpop.permute.xlu0 %1163
  %v1166 = vadd.f32 %v1156, %v1164
  %v1167 = vtanh.pop %v1166
  %1169 = vrot.lane.b32.xlu0 %v1167, 64
  %v1170 = vpop.permute.xlu0 %1169
  %v1172 = vmul.f32 %v1153, %v1170
  %v1173 = vpack.c.bf16 %v1172, %v1172
  %1175 = vrot.lane.b32.xlu0 %v1173, 32
  %v1176 = vpop.permute.xlu0 %1175
  %v1178 = vsel %vm103, %v1176, 0
  %1180 = vmatprep.subr.bf16.mxu0 0
  %1181 = vmatpush1.bf16.msra.mxu0 0
  %1182 = vmatprep.subr.bf16.mxu0 0
  %1183 = vmatpush1.bf16.msra.mxu0 0
  %1184 = vmatprep.subr.bf16.mxu0 0
  %1185 = vmatpush1.bf16.msra.mxu0 0
  %1186 = vmatprep.subr.bf16.mxu0 0
  %1187 = vmatpush1.bf16.msra.mxu0 0
  %1188 = vmatprep.subr.bf16.mxu0 0
  %1189 = vmatpush1.bf16.msra.mxu0 0
  %1190 = vmatprep.subr.bf16.mxu0 0
  %1191 = vmatpush1.bf16.msra.mxu0 0
  %1192 = vmatprep.subr.bf16.mxu0 0
  %1193 = vmatpush1.bf16.msra.mxu0 %v238
  %1194 = vmatprep.subr.bf16.mxu0 0
  %1195 = vmatpush1.bf16.msra.mxu0 %v237
  %1196 = vmatprep.subr.bf16.mxu0 0
  %1197 = vmatpush2.bf16.msra.mxu0 0
  %1198 = vmatprep.subr.bf16.mxu0 0
  %1199 = vmatpush2.bf16.msra.mxu0 0
  %1200 = vmatprep.subr.bf16.mxu0 0
  %1201 = vmatpush2.bf16.msra.mxu0 0
  %1202 = vmatprep.subr.bf16.mxu0 0
  %1203 = vmatpush2.bf16.msra.mxu0 0
  %1204 = vmatprep.subr.bf16.mxu0 0
  %1205 = vmatpush2.bf16.msra.mxu0 0
  %1206 = vmatprep.subr.bf16.mxu0 0
  %1207 = vmatpush2.bf16.msra.mxu0 0
  %1208 = vmatprep.subr.bf16.mxu0 0
  %1209 = vmatpush2.bf16.msra.mxu0 0
  %1210 = vmatprep.subr.bf16.mxu0 0
  %1211 = vmatpush2.bf16.msra.mxu0 0
  %1212 = vmatprep.mubr.bf16.mxu0 0
  %1213 = vmatmul.mubr.bf16.gmra.mxu0 %v1178
  %v1214 = vpop.f32.mrf.mxu0
  %v1215 = vadd.f32 0.0, %v1214
  %v1216 = vpop.f32.mrf.mxu0
  %v1217 = vpop.f32.mrf.mxu0
  %v1218 = vpop.f32.mrf.mxu0
  %1219 = vdwg.mxu0
  %v1220 = vadd.f32 %v214, %v1215
  %v1221 = vsub.f32 0.0, %v1220
  %v1222 = vmul.f32 %v1221, 1.442695
  %v1223 = vpow.pop %v1222
  %v1224 = vadd.f32 %v1223, 1.0
  %v1225 = vrcp.pop %v1224
  %v1226 = vmul.f32 %v1225, 2.0
  %v1227 = vsub.f32 %v1226, 1.0
  %v1228 = vmul.f32 %v1225, %v1166
  %1230 = vrot.lane.b32.xlu0 %v1227, 64
  %v1231 = vpop.permute.xlu0 %1230
  %v1233 = vmul.f32 %v1225, %v1231
  %1235 = vrot.lane.b32.xlu0 %v1233, 32
  %v1236 = vpop.permute.xlu0 %1235
  %v1238 = vadd.f32 %v1228, %v1236
  %v1239 = vtanh.pop %v1238
  %1241 = vrot.lane.b32.xlu0 %v1239, 64
  %v1242 = vpop.permute.xlu0 %1241
  %v1244 = vmul.f32 %v1225, %v1242
  %v1245 = vpack.c.bf16 %v1244, %v1244
  %1247 = vrot.lane.b32.xlu0 %v1245, 32
  %v1248 = vpop.permute.xlu0 %1247
  %v1250 = vsel %vm103, %v1248, 0
  %1252 = vmatprep.subr.bf16.mxu0 0
  %1253 = vmatpush1.bf16.msra.mxu0 0
  %1254 = vmatprep.subr.bf16.mxu0 0
  %1255 = vmatpush1.bf16.msra.mxu0 0
  %1256 = vmatprep.subr.bf16.mxu0 0
  %1257 = vmatpush1.bf16.msra.mxu0 0
  %1258 = vmatprep.subr.bf16.mxu0 0
  %1259 = vmatpush1.bf16.msra.mxu0 0
  %1260 = vmatprep.subr.bf16.mxu0 0
  %1261 = vmatpush1.bf16.msra.mxu0 0
  %1262 = vmatprep.subr.bf16.mxu0 0
  %1263 = vmatpush1.bf16.msra.mxu0 0
  %1264 = vmatprep.subr.bf16.mxu0 0
  %1265 = vmatpush1.bf16.msra.mxu0 %v238
  %1266 = vmatprep.subr.bf16.mxu0 0
  %1267 = vmatpush1.bf16.msra.mxu0 %v237
  %1268 = vmatprep.subr.bf16.mxu0 0
  %1269 = vmatpush2.bf16.msra.mxu0 0
  %1270 = vmatprep.subr.bf16.mxu0 0
  %1271 = vmatpush2.bf16.msra.mxu0 0
  %1272 = vmatprep.subr.bf16.mxu0 0
  %1273 = vmatpush2.bf16.msra.mxu0 0
  %1274 = vmatprep.subr.bf16.mxu0 0
  %1275 = vmatpush2.bf16.msra.mxu0 0
  %1276 = vmatprep.subr.bf16.mxu0 0
  %1277 = vmatpush2.bf16.msra.mxu0 0
  %1278 = vmatprep.subr.bf16.mxu0 0
  %1279 = vmatpush2.bf16.msra.mxu0 0
  %1280 = vmatprep.subr.bf16.mxu0 0
  %1281 = vmatpush2.bf16.msra.mxu0 0
  %1282 = vmatprep.subr.bf16.mxu0 0
  %1283 = vmatpush2.bf16.msra.mxu0 0
  %1284 = vmatprep.mubr.bf16.mxu0 0
  %1285 = vmatmul.mubr.bf16.gmra.mxu0 %v1250
  %v1286 = vpop.f32.mrf.mxu0
  %v1287 = vadd.f32 0.0, %v1286
  %v1288 = vpop.f32.mrf.mxu0
  %v1289 = vpop.f32.mrf.mxu0
  %v1290 = vpop.f32.mrf.mxu0
  %1291 = vdwg.mxu0
  %v1292 = vadd.f32 %v219, %v1287
  %v1293 = vsub.f32 0.0, %v1292
  %v1294 = vmul.f32 %v1293, 1.442695
  %v1295 = vpow.pop %v1294
  %v1296 = vadd.f32 %v1295, 1.0
  %v1297 = vrcp.pop %v1296
  %v1298 = vmul.f32 %v1297, 2.0
  %v1299 = vsub.f32 %v1298, 1.0
  %v1300 = vmul.f32 %v1297, %v1238
  %1302 = vrot.lane.b32.xlu0 %v1299, 64
  %v1303 = vpop.permute.xlu0 %1302
  %v1305 = vmul.f32 %v1297, %v1303
  %1307 = vrot.lane.b32.xlu0 %v1305, 32
  %v1308 = vpop.permute.xlu0 %1307
  %v1310 = vadd.f32 %v1300, %v1308
  %v1311 = vtanh.pop %v1310
  %1313 = vrot.lane.b32.xlu0 %v1311, 64
  %v1314 = vpop.permute.xlu0 %1313
  %v1316 = vmul.f32 %v1297, %v1314
  %v1317 = vpack.c.bf16 %v1316, %v1316
  %1319 = vrot.lane.b32.xlu0 %v1317, 32
  %v1320 = vpop.permute.xlu0 %1319
  %v1322 = vsel %vm103, %v1320, 0
  %1324 = vmatprep.subr.bf16.mxu0 0
  %1325 = vmatpush1.bf16.msra.mxu0 0
  %1326 = vmatprep.subr.bf16.mxu0 0
  %1327 = vmatpush1.bf16.msra.mxu0 0
  %1328 = vmatprep.subr.bf16.mxu0 0
  %1329 = vmatpush1.bf16.msra.mxu0 0
  %1330 = vmatprep.subr.bf16.mxu0 0
  %1331 = vmatpush1.bf16.msra.mxu0 0
  %1332 = vmatprep.subr.bf16.mxu0 0
  %1333 = vmatpush1.bf16.msra.mxu0 0
  %1334 = vmatprep.subr.bf16.mxu0 0
  %1335 = vmatpush1.bf16.msra.mxu0 0
  %1336 = vmatprep.subr.bf16.mxu0 0
  %1337 = vmatpush1.bf16.msra.mxu0 %v238
  %1338 = vmatprep.subr.bf16.mxu0 0
  %1339 = vmatpush1.bf16.msra.mxu0 %v237
  %1340 = vmatprep.subr.bf16.mxu0 0
  %1341 = vmatpush2.bf16.msra.mxu0 0
  %1342 = vmatprep.subr.bf16.mxu0 0
  %1343 = vmatpush2.bf16.msra.mxu0 0
  %1344 = vmatprep.subr.bf16.mxu0 0
  %1345 = vmatpush2.bf16.msra.mxu0 0
  %1346 = vmatprep.subr.bf16.mxu0 0
  %1347 = vmatpush2.bf16.msra.mxu0 0
  %1348 = vmatprep.subr.bf16.mxu0 0
  %1349 = vmatpush2.bf16.msra.mxu0 0
  %1350 = vmatprep.subr.bf16.mxu0 0
  %1351 = vmatpush2.bf16.msra.mxu0 0
  %1352 = vmatprep.subr.bf16.mxu0 0
  %1353 = vmatpush2.bf16.msra.mxu0 0
  %1354 = vmatprep.subr.bf16.mxu0 0
  %1355 = vmatpush2.bf16.msra.mxu0 0
  %1356 = vmatprep.mubr.bf16.mxu0 0
  %1357 = vmatmul.mubr.bf16.gmra.mxu0 %v1322
  %v1358 = vpop.f32.mrf.mxu0
  %v1359 = vadd.f32 0.0, %v1358
  %v1360 = vpop.f32.mrf.mxu0
  %v1361 = vpop.f32.mrf.mxu0
  %v1362 = vpop.f32.mrf.mxu0
  %1363 = vdwg.mxu0
  %v1364 = vadd.f32 %v222, %v1359
  %v1365 = vsub.f32 0.0, %v1364
  %v1366 = vmul.f32 %v1365, 1.442695
  %v1367 = vpow.pop %v1366
  %v1368 = vadd.f32 %v1367, 1.0
  %v1369 = vrcp.pop %v1368
  %v1370 = vmul.f32 %v1369, 2.0
  %v1371 = vsub.f32 %v1370, 1.0
  %v1372 = vmul.f32 %v1369, %v1310
  %1374 = vrot.lane.b32.xlu0 %v1371, 64
  %v1375 = vpop.permute.xlu0 %1374
  %v1377 = vmul.f32 %v1369, %v1375
  %1379 = vrot.lane.b32.xlu0 %v1377, 32
  %v1380 = vpop.permute.xlu0 %1379
  %v1382 = vadd.f32 %v1372, %v1380
  %v1383 = vtanh.pop %v1382
  %1385 = vrot.lane.b32.xlu0 %v1383, 64
  %v1386 = vpop.permute.xlu0 %1385
  %v1388 = vmul.f32 %v1369, %v1386
  %v1389 = vpack.c.bf16 %v380, %v308
  %v1390 = vpack.c.bf16 %v524, %v452
  %v1391 = vpack.c.bf16 %v668, %v596
  %v1392 = vpack.c.bf16 %v812, %v740
  %v1393 = vpack.c.bf16 %v956, %v884
  %v1394 = vpack.c.bf16 %v1100, %v1028
  %v1395 = vpack.c.bf16 %v1244, %v1172
  %v1396 = vpack.c.bf16 %v1388, %v1316
  %v1397 = vld [vmem:[%s4] sm:$0xf]
  %v1398 = vld [vmem:[%s4 + $0x4] sm:$0xf]
  %v1399 = vld [vmem:[%s4 + $0x8] sm:$0xf]
  %v1400 = vld [vmem:[%s4 + $0xc] sm:$0xf]
  %v1401 = vld [vmem:[%s5] sm:$0x1]
  %v1403 = vlaneseq
  %v1404 = vshrl.u32 %v1403, 7
  %v1405 = vsub.s32 0, %v1404
  %v1406 = vrot.slane %v1401, %v1405
  %1416 = vrot.lane.b32.xlu0 %v1389, 32
  %v1417 = vpop.permute.xlu0 %1416
  %1418 = vrot.lane.b32.xlu0 %v1390, 32
  %v1419 = vpop.permute.xlu0 %1418
  %1420 = vrot.lane.b32.xlu0 %v1391, 32
  %v1421 = vpop.permute.xlu0 %1420
  %1422 = vrot.lane.b32.xlu0 %v1392, 32
  %v1423 = vpop.permute.xlu0 %1422
  %1424 = vrot.lane.b32.xlu0 %v1393, 32
  %v1425 = vpop.permute.xlu0 %1424
  %1426 = vrot.lane.b32.xlu0 %v1394, 32
  %v1427 = vpop.permute.xlu0 %1426
  %1428 = vrot.lane.b32.xlu0 %v1395, 32
  %v1429 = vpop.permute.xlu0 %1428
  %1430 = vrot.lane.b32.xlu0 %v1396, 32
  %v1431 = vpop.permute.xlu0 %1430
  %v1436 = vunpack.c.l.b16 %v1397
  %v1437 = vunpack.c.l.b16 %v1398
  %v1438 = vunpack.c.l.b16 %v1399
  %v1439 = vunpack.c.l.b16 %v1400
  %v1440 = vpack.c.b16 %v1437, %v1436
  %v1441 = vpack.c.b16 %v1439, %v1438
  %v1445 = vsel %vm103, %v1417, 0
  %v1448 = vsel %vm103, %v1419, 0
  %v1451 = vsel %vm103, %v1421, 0
  %v1454 = vsel %vm103, %v1423, 0
  %v1457 = vsel %vm103, %v1425, 0
  %v1460 = vsel %vm103, %v1427, 0
  %v1463 = vsel %vm103, %v1429, 0
  %v1466 = vsel %vm103, %v1431, 0
  %1468 = vmatprep.subr.bf16.mxu0 0
  %1469 = vmatpush1.bf16.msra.mxu0 0
  %1470 = vmatprep.subr.bf16.mxu0 0
  %1471 = vmatpush1.bf16.msra.mxu0 0
  %1472 = vmatprep.subr.bf16.mxu0 0
  %1473 = vmatpush1.bf16.msra.mxu0 0
  %1474 = vmatprep.subr.bf16.mxu0 0
  %1475 = vmatpush1.bf16.msra.mxu0 0
  %1476 = vmatprep.subr.bf16.mxu0 0
  %1477 = vmatpush1.bf16.msra.mxu0 0
  %1478 = vmatprep.subr.bf16.mxu0 0
  %1479 = vmatpush1.bf16.msra.mxu0 0
  %1480 = vmatprep.subr.bf16.mxu0 0
  %1481 = vmatpush1.bf16.msra.mxu0 %v1441
  %1482 = vmatprep.subr.bf16.mxu0 0
  %1483 = vmatpush1.bf16.msra.mxu0 %v1440
  %1484 = vmatprep.subr.bf16.mxu0 0
  %1485 = vmatpush2.bf16.msra.mxu0 0
  %1486 = vmatprep.subr.bf16.mxu0 0
  %1487 = vmatpush2.bf16.msra.mxu0 0
  %1488 = vmatprep.subr.bf16.mxu0 0
  %1489 = vmatpush2.bf16.msra.mxu0 0
  %1490 = vmatprep.subr.bf16.mxu0 0
  %1491 = vmatpush2.bf16.msra.mxu0 0
  %1492 = vmatprep.subr.bf16.mxu0 0
  %1493 = vmatpush2.bf16.msra.mxu0 0
  %1494 = vmatprep.subr.bf16.mxu0 0
  %1495 = vmatpush2.bf16.msra.mxu0 0
  %1496 = vmatprep.subr.bf16.mxu0 0
  %1497 = vmatpush2.bf16.msra.mxu0 0
  %1498 = vmatprep.subr.bf16.mxu0 0
  %1499 = vmatpush2.bf16.msra.mxu0 0
  %1500 = vmatprep.mubr.bf16.mxu0 0
  %1501 = vmatmul.mubr.bf16.gmra.mxu0 %v1445
  %v1502 = vpop.f32.mrf.mxu0
  %v1503 = vadd.f32 %v1406, %v1502
  %v1504 = vpop.f32.mrf.mxu0
  %v1505 = vpop.f32.mrf.mxu0
  %v1506 = vadd.f32 %v1406, %v1505
  %v1507 = vpop.f32.mrf.mxu0
  %1508 = vmatprep.mubr.bf16.mxu0 0
  %1509 = vmatmul.mubr.bf16.gmra.mxu0 %v1448
  %v1510 = vpop.f32.mrf.mxu0
  %v1511 = vadd.f32 %v1406, %v1510
  %v1512 = vpop.f32.mrf.mxu0
  %v1513 = vpop.f32.mrf.mxu0
  %v1514 = vadd.f32 %v1406, %v1513
  %v1515 = vpop.f32.mrf.mxu0
  %1516 = vmatprep.mubr.bf16.mxu0 0
  %1517 = vmatmul.mubr.bf16.gmra.mxu0 %v1451
  %v1518 = vpop.f32.mrf.mxu0
  %v1519 = vadd.f32 %v1406, %v1518
  %v1520 = vpop.f32.mrf.mxu0
  %v1521 = vpop.f32.mrf.mxu0
  %v1522 = vadd.f32 %v1406, %v1521
  %v1523 = vpop.f32.mrf.mxu0
  %1524 = vmatprep.mubr.bf16.mxu0 0
  %1525 = vmatmul.mubr.bf16.gmra.mxu0 %v1454
  %v1526 = vpop.f32.mrf.mxu0
  %v1527 = vadd.f32 %v1406, %v1526
  %v1528 = vpop.f32.mrf.mxu0
  %v1529 = vpop.f32.mrf.mxu0
  %v1530 = vadd.f32 %v1406, %v1529
  %v1531 = vpop.f32.mrf.mxu0
  %1532 = vmatprep.mubr.bf16.mxu0 0
  %1533 = vmatmul.mubr.bf16.gmra.mxu0 %v1457
  %v1534 = vpop.f32.mrf.mxu0
  %v1535 = vadd.f32 %v1406, %v1534
  %v1536 = vpop.f32.mrf.mxu0
  %v1537 = vpop.f32.mrf.mxu0
  %v1538 = vadd.f32 %v1406, %v1537
  %v1539 = vpop.f32.mrf.mxu0
  %1540 = vmatprep.mubr.bf16.mxu0 0
  %1541 = vmatmul.mubr.bf16.gmra.mxu0 %v1460
  %v1542 = vpop.f32.mrf.mxu0
  %v1543 = vadd.f32 %v1406, %v1542
  %v1544 = vpop.f32.mrf.mxu0
  %v1545 = vpop.f32.mrf.mxu0
  %v1546 = vadd.f32 %v1406, %v1545
  %v1547 = vpop.f32.mrf.mxu0
  %1548 = vmatprep.mubr.bf16.mxu0 0
  %1549 = vmatmul.mubr.bf16.gmra.mxu0 %v1463
  %v1550 = vpop.f32.mrf.mxu0
  %v1551 = vadd.f32 %v1406, %v1550
  %v1552 = vpop.f32.mrf.mxu0
  %v1553 = vpop.f32.mrf.mxu0
  %v1554 = vadd.f32 %v1406, %v1553
  %v1555 = vpop.f32.mrf.mxu0
  %1556 = vmatprep.mubr.bf16.mxu0 0
  %1557 = vmatmul.mubr.bf16.gmra.mxu0 %v1466
  %v1558 = vpop.f32.mrf.mxu0
  %v1559 = vadd.f32 %v1406, %v1558
  %v1560 = vpop.f32.mrf.mxu0
  %v1561 = vpop.f32.mrf.mxu0
  %v1562 = vadd.f32 %v1406, %v1561
  %v1563 = vpop.f32.mrf.mxu0
  %1564 = vdwg.mxu0
  %v1565 = vmax.f32 %v1503, 0.0
  %v1566 = vmax.f32 %v1506, 0.0
  %v1567 = vmax.f32 %v1511, 0.0
  %v1568 = vmax.f32 %v1514, 0.0
  %v1569 = vmax.f32 %v1519, 0.0
  %v1570 = vmax.f32 %v1522, 0.0
  %v1571 = vmax.f32 %v1527, 0.0
  %v1572 = vmax.f32 %v1530, 0.0
  %v1573 = vmax.f32 %v1535, 0.0
  %v1574 = vmax.f32 %v1538, 0.0
  %v1575 = vmax.f32 %v1543, 0.0
  %v1576 = vmax.f32 %v1546, 0.0
  %v1577 = vmax.f32 %v1551, 0.0
  %v1578 = vmax.f32 %v1554, 0.0
  %v1579 = vmax.f32 %v1559, 0.0
  %v1580 = vmax.f32 %v1562, 0.0
  %1581 = vst.msk [vmem:[%s6] sm:$0xff] %vm103, %v1565
  %1582 = vst.msk [vmem:[%s6 + $0x8] sm:$0xff] %vm103, %v1566
  %1583 = vst.msk [vmem:[%s6 + $0x10] sm:$0xff] %vm103, %v1567
  %1584 = vst.msk [vmem:[%s6 + $0x18] sm:$0xff] %vm103, %v1568
  %1585 = vst.msk [vmem:[%s6 + $0x20] sm:$0xff] %vm103, %v1569
  %1586 = vst.msk [vmem:[%s6 + $0x28] sm:$0xff] %vm103, %v1570
  %1587 = vst.msk [vmem:[%s6 + $0x30] sm:$0xff] %vm103, %v1571
  %1588 = vst.msk [vmem:[%s6 + $0x38] sm:$0xff] %vm103, %v1572
  %1589 = vst.msk [vmem:[%s6 + $0x40] sm:$0xff] %vm103, %v1573
  %1590 = vst.msk [vmem:[%s6 + $0x48] sm:$0xff] %vm103, %v1574
  %1591 = vst.msk [vmem:[%s6 + $0x50] sm:$0xff] %vm103, %v1575
  %1592 = vst.msk [vmem:[%s6 + $0x58] sm:$0xff] %vm103, %v1576
  %1593 = vst.msk [vmem:[%s6 + $0x60] sm:$0xff] %vm103, %v1577
  %1594 = vst.msk [vmem:[%s6 + $0x68] sm:$0xff] %vm103, %v1578
  %1595 = vst.msk [vmem:[%s6 + $0x70] sm:$0xff] %vm103, %v1579
  %1596 = vst.msk [vmem:[%s6 + $0x78] sm:$0xff] %vm103, %v1580
  // Predicated region
  $region26: #{variant_rnn_forward.1} parent=0 // pred_check
    _
  $region27: #{variant_rnn_forward.1} parent=0 // pred_check_branch
    %1598 = sbr.rel (0) target = $region29
  $region28: #{variant_rnn_forward.1} parent=0 // pred_region
    _
  $region29: #{variant_rnn_forward.1} parent=0 // pred_fallthru
    _
  // Predicated region
  $region30: #{variant_rnn_forward.1} parent=0 // pred_check
    _
  $region31: #{variant_rnn_forward.1} parent=0 // pred_check_branch
    %1600 = sbr.rel (0) target = $region33
  $region32: #{variant_rnn_forward.1} parent=0 // pred_region
    _
  $region33: #{variant_rnn_forward.1} parent=0 // pred_fallthru
    _

</llo_original>
